<compile_context>
chip_gen: v7x
topology: tpu7x:2x2x1
jax: 0.10.0
libtpu: 0.0.40
codegen_flags: <defaults>
</compile_context>

<pallas_src>
import jax
import jax.numpy as jnp
from jax.experimental import pallas as pl
from jax.experimental.pallas import tpu as pltpu

_LANE = 128


def _round_up(n, m):
    return ((n + m - 1) // m) * m


def _pick_tiling(B, max_block_m=512):
    """Return (block_m, B_pad) with B_pad a multiple of block_m.

    - B <= 128: single tile of round_up(B, 16) rows (no 128-row floor).
    - else: B_pad = round_up(B, 128); block_m is the largest of
      {512, 256, 128} (capped at max_block_m) that divides B_pad and gives
      a grid of >= 2 steps; falls back to 128.
    """
    if B <= 128:
        bm = _round_up(max(B, 8), 16)
        return bm, bm
    B_pad = _round_up(B, 128)
    for bm in (512, 256, 128):
        if bm <= max_block_m and B_pad % bm == 0 and B_pad // bm >= 2:
            return bm, B_pad
    return 128, B_pad


def _mlp_kernel(x_ref, w0_ref, w1_ref, w2_ref, w3_ref, w4_ref, w5_ref, w6_ref,
                o_ref):
    """Full bias-free MLP with ReLU for one batch tile.

    bf16 MXU inputs, f32 accumulation, ReLU on the f32 accumulator, bf16
    loop-carried activations, f32 lane-dense (…,128) output.
    """
    # Layer 0: bf16 x tile @ bf16 W0 -> f32 accumulator.
    y = jnp.dot(x_ref[...], w0_ref[...], preferred_element_type=jnp.float32)
    h = jnp.maximum(y, 0.0).astype(jnp.bfloat16)          # (bm, 256)

    for w_ref in (w1_ref, w2_ref, w3_ref, w4_ref, w5_ref):
        y = jnp.dot(h, w_ref[...], preferred_element_type=jnp.float32)
        h = jnp.maximum(y, 0.0).astype(jnp.bfloat16)

    # Last layer: no ReLU.  128-wide output -> unmasked stores.
    o_ref[...] = jnp.dot(h, w6_ref[...],
                         preferred_element_type=jnp.float32).astype(o_ref.dtype)


def prepare_weights(weights):
    """Pad each (in, out) weight to 128-lane-aligned dims and cast to bf16.

    Call ONCE (e.g. at init / model load) and reuse the result across
    forward calls — this work must not be redone per call.
    """
    dims = [weights[0].shape[0]] + [w.shape[1] for w in weights]
    pdims = [_round_up(d, _LANE) for d in dims]
    padded = []
    for li, w in enumerate(weights):
        pad_in = pdims[li] - w.shape[0]
        pad_out = pdims[li + 1] - w.shape[1]
        padded.append(jnp.pad(w.astype(jnp.bfloat16),
                              ((0, pad_in), (0, pad_out))))
    return tuple(padded)


def net_forward(x_nchw, padded_weights, labels, *, max_block_m=512):
    """Run the Net forward pass.

    x_nchw:         (B, 1, H, W) float32
    padded_weights: output of prepare_weights() — 7 bf16 (pin, pout) arrays
    labels:         number of real output columns
    returns:        (B, labels) float32
    """
    B = x_nchw.shape[0]
    x = x_nchw.reshape(B, -1).astype(jnp.bfloat16)         # torch.flatten(x, 1)
    in_dim = x.shape[1]

    pad_in = padded_weights[0].shape[0]
    out_dim = padded_weights[-1].shape[1]

    block_m, B_pad = _pick_tiling(B, max_block_m)

    # Single fused pad+cast pass over the input.
    x_p = jnp.pad(x, ((0, B_pad - B), (0, pad_in - in_dim)))

    grid = (B_pad // block_m,)

    # x / out tiled over the batch; weights (~0.75 MB bf16 total) use constant
    # index_maps so the same resident block is reused every grid step.
    x_spec = pl.BlockSpec((block_m, pad_in), lambda i: (i, 0))
    w_specs = [pl.BlockSpec(w.shape, lambda i: (0, 0)) for w in padded_weights]
    out_spec = pl.BlockSpec((block_m, out_dim), lambda i: (i, 0))

    out_padded = pl.pallas_call(
        _mlp_kernel,
        out_shape=jax.ShapeDtypeStruct((B_pad, out_dim), jnp.float32),
        grid_spec=pltpu.PrefetchScalarGridSpec(
            num_scalar_prefetch=0,
            grid=grid,
            in_specs=[x_spec] + w_specs,
            out_specs=out_spec,
        ),
        compiler_params=pltpu.CompilerParams(
            dimension_semantics=("parallel",),   # megacore shards batch on v7x
        ),
    )(x_p, *padded_weights)

    return out_padded[:B, :labels]


def init_weights(key, input_size=(25, 25), labels=7):
    """Deterministic init of the bias-free `final*` layers.

    Returns weights already transposed to (in_features, out_features).
    """
    in_dim = input_size[0] * input_size[1]
    dims = [(in_dim, 256), (256, 256), (256, 256), (256, 128),
            (128, 64), (64, 32), (32, labels)]
    keys = jax.random.split(key, len(dims))
    weights = []
    for k, (din, dout) in zip(keys, dims):
        # Kaiming-uniform-ish bound like PyTorch's default Linear init.
        bound = 1.0 / jnp.sqrt(jnp.float32(din))
        w = jax.random.uniform(k, (din, dout), jnp.float32, -bound, bound)
        weights.append(w)
    return weights


def _reference_forward(x_nchw, weights):
    """Pure-JAX reference with the same bf16-at-MXU / f32-accumulate scheme."""
    h = x_nchw.reshape(x_nchw.shape[0], -1)
    for li, w in enumerate(weights):
        y = jnp.dot(h.astype(jnp.bfloat16), w.astype(jnp.bfloat16),
                    preferred_element_type=jnp.float32)
        h = jnp.maximum(y, 0.0) if li < len(weights) - 1 else y
    return h


if __name__ == "__main__":
    key = jax.random.PRNGKey(0)
    k_x, k_x2, k_w = jax.random.split(key, 3)

    input_size = (25, 25)        # valid per the module (25 in {25, 50, 100})
    labels = 7
    H, W = input_size

    weights = init_weights(k_w, input_size=input_size, labels=labels)
    padded_weights = prepare_weights(weights)     # pad/cast ONCE, reuse below

    # --- small batch (single 16-row tile path) ------------------------------
    B = 8
    x = jax.random.normal(k_x, (B, 1, H, W), jnp.float32)   # NCHW like PyTorch
    out = jax.block_until_ready(net_forward(x, padded_weights, labels))
    assert out.shape == (B, labels), out.shape
    ref = _reference_forward(x, weights)
    assert bool(jnp.all(jnp.isfinite(out)))
    assert bool(jnp.allclose(out, ref, rtol=2e-2, atol=2e-3)), (
        float(jnp.max(jnp.abs(out - ref))))

    # --- medium batch (multi-step grid path, pad-decoupled tiling) ----------
    B2 = 260                      # -> B_pad=384, block_m=128, grid of 3 steps
    x2 = jax.random.normal(k_x2, (B2, 1, H, W), jnp.float32)
    out2 = jax.block_until_ready(net_forward(x2, padded_weights, labels))
    assert out2.shape == (B2, labels), out2.shape
    ref2 = _reference_forward(x2, weights)
    assert bool(jnp.all(jnp.isfinite(out2)))
    assert bool(jnp.allclose(out2, ref2, rtol=2e-2, atol=2e-3)), (
        float(jnp.max(jnp.abs(out2 - ref2))))

    print("KERNEL_OK")
</pallas_src>

<mosaic_0001>
module attributes {stable_mosaic.version = 11 : i64} {
  func.func @_mlp_kernel(%arg0: i32, %arg1: memref<16x640xbf16, #tpu.memory_space<vmem>>, %arg2: memref<640x256xbf16, #tpu.memory_space<vmem>>, %arg3: memref<256x256xbf16, #tpu.memory_space<vmem>>, %arg4: memref<256x256xbf16, #tpu.memory_space<vmem>>, %arg5: memref<256x128xbf16, #tpu.memory_space<vmem>>, %arg6: memref<128x128xbf16, #tpu.memory_space<vmem>>, %arg7: memref<128x128xbf16, #tpu.memory_space<vmem>>, %arg8: memref<128x128xbf16, #tpu.memory_space<vmem>>, %arg9: memref<16x128xf32, #tpu.memory_space<vmem>>) attributes {dimension_semantics = [#tpu.dimension_semantics<parallel>], iteration_bounds = array<i64: 1>, scalar_prefetch = 0 : i64, scratch_operands = 0 : i64, tpu.core_type = #tpu.core_type<tc>, window_params = [{transform_indices = @transform_0, window_bounds = array<i64: 16, 640>}, {pipeline_mode = #tpu.pipeline_mode<synchronous>, transform_indices = @transform_1, window_bounds = array<i64: 640, 256>}, {pipeline_mode = #tpu.pipeline_mode<synchronous>, transform_indices = @transform_2, window_bounds = array<i64: 256, 256>}, {pipeline_mode = #tpu.pipeline_mode<synchronous>, transform_indices = @transform_3, window_bounds = array<i64: 256, 256>}, {pipeline_mode = #tpu.pipeline_mode<synchronous>, transform_indices = @transform_4, window_bounds = array<i64: 256, 128>}, {pipeline_mode = #tpu.pipeline_mode<synchronous>, transform_indices = @transform_5, window_bounds = array<i64: 128, 128>}, {pipeline_mode = #tpu.pipeline_mode<synchronous>, transform_indices = @transform_6, window_bounds = array<i64: 128, 128>}, {pipeline_mode = #tpu.pipeline_mode<synchronous>, transform_indices = @transform_7, window_bounds = array<i64: 128, 128>}, {transform_indices = @transform_8, window_bounds = array<i64: 16, 128>}]} {
    %c0 = arith.constant 0 : index
    %c0_0 = arith.constant 0 : index
    %0 = vector.load %arg1[%c0, %c0_0] : memref<16x640xbf16, #tpu.memory_space<vmem>>, vector<16x640xbf16>
    %c0_1 = arith.constant 0 : index
    %c0_2 = arith.constant 0 : index
    %1 = vector.load %arg2[%c0_1, %c0_2] : memref<640x256xbf16, #tpu.memory_space<vmem>>, vector<640x256xbf16>
    %cst = arith.constant dense<0.000000e+00> : vector<16x256xf32>
    %2 = tpu.matmul %0, %1, %cst {dimension_numbers = #tpu.dot_dimension_numbers<[1], [0], [0], [1], [0, 0, 1, 1], [], []>} : vector<16x640xbf16>, vector<640x256xbf16>, vector<16x256xf32> -> vector<16x256xf32>
    %cst_3 = arith.constant 0.000000e+00 : f32
    %3 = vector.broadcast %cst_3 : f32 to vector<16x256xf32>
    %4 = arith.maximumf %2, %3 : vector<16x256xf32>
    %5 = arith.truncf %4 : vector<16x256xf32> to vector<16x256xbf16>
    %c0_4 = arith.constant 0 : index
    %c0_5 = arith.constant 0 : index
    %6 = vector.load %arg3[%c0_4, %c0_5] : memref<256x256xbf16, #tpu.memory_space<vmem>>, vector<256x256xbf16>
    %cst_6 = arith.constant dense<0.000000e+00> : vector<16x256xf32>
    %7 = tpu.matmul %5, %6, %cst_6 {dimension_numbers = #tpu.dot_dimension_numbers<[1], [0], [0], [1], [0, 0, 1, 1], [], []>} : vector<16x256xbf16>, vector<256x256xbf16>, vector<16x256xf32> -> vector<16x256xf32>
    %cst_7 = arith.constant 0.000000e+00 : f32
    %8 = vector.broadcast %cst_7 : f32 to vector<16x256xf32>
    %9 = arith.maximumf %7, %8 : vector<16x256xf32>
    %10 = arith.truncf %9 : vector<16x256xf32> to vector<16x256xbf16>
    %c0_8 = arith.constant 0 : index
    %c0_9 = arith.constant 0 : index
    %11 = vector.load %arg4[%c0_8, %c0_9] : memref<256x256xbf16, #tpu.memory_space<vmem>>, vector<256x256xbf16>
    %cst_10 = arith.constant dense<0.000000e+00> : vector<16x256xf32>
    %12 = tpu.matmul %10, %11, %cst_10 {dimension_numbers = #tpu.dot_dimension_numbers<[1], [0], [0], [1], [0, 0, 1, 1], [], []>} : vector<16x256xbf16>, vector<256x256xbf16>, vector<16x256xf32> -> vector<16x256xf32>
    %cst_11 = arith.constant 0.000000e+00 : f32
    %13 = vector.broadcast %cst_11 : f32 to vector<16x256xf32>
    %14 = arith.maximumf %12, %13 : vector<16x256xf32>
    %15 = arith.truncf %14 : vector<16x256xf32> to vector<16x256xbf16>
    %c0_12 = arith.constant 0 : index
    %c0_13 = arith.constant 0 : index
    %16 = vector.load %arg5[%c0_12, %c0_13] : memref<256x128xbf16, #tpu.memory_space<vmem>>, vector<256x128xbf16>
    %cst_14 = arith.constant dense<0.000000e+00> : vector<16x128xf32>
    %17 = tpu.matmul %15, %16, %cst_14 {dimension_numbers = #tpu.dot_dimension_numbers<[1], [0], [0], [1], [0, 0, 1, 1], [], []>} : vector<16x256xbf16>, vector<256x128xbf16>, vector<16x128xf32> -> vector<16x128xf32>
    %cst_15 = arith.constant 0.000000e+00 : f32
    %18 = vector.broadcast %cst_15 : f32 to vector<16x128xf32>
    %19 = arith.maximumf %17, %18 : vector<16x128xf32>
    %20 = arith.truncf %19 : vector<16x128xf32> to vector<16x128xbf16>
    %c0_16 = arith.constant 0 : index
    %c0_17 = arith.constant 0 : index
    %21 = vector.load %arg6[%c0_16, %c0_17] : memref<128x128xbf16, #tpu.memory_space<vmem>>, vector<128x128xbf16>
    %cst_18 = arith.constant dense<0.000000e+00> : vector<16x128xf32>
    %22 = tpu.matmul %20, %21, %cst_18 {dimension_numbers = #tpu.dot_dimension_numbers<[1], [0], [0], [1], [0, 0, 1, 1], [], []>} : vector<16x128xbf16>, vector<128x128xbf16>, vector<16x128xf32> -> vector<16x128xf32>
    %cst_19 = arith.constant 0.000000e+00 : f32
    %23 = vector.broadcast %cst_19 : f32 to vector<16x128xf32>
    %24 = arith.maximumf %22, %23 : vector<16x128xf32>
    %25 = arith.truncf %24 : vector<16x128xf32> to vector<16x128xbf16>
    %c0_20 = arith.constant 0 : index
    %c0_21 = arith.constant 0 : index
    %26 = vector.load %arg7[%c0_20, %c0_21] : memref<128x128xbf16, #tpu.memory_space<vmem>>, vector<128x128xbf16>
    %cst_22 = arith.constant dense<0.000000e+00> : vector<16x128xf32>
    %27 = tpu.matmul %25, %26, %cst_22 {dimension_numbers = #tpu.dot_dimension_numbers<[1], [0], [0], [1], [0, 0, 1, 1], [], []>} : vector<16x128xbf16>, vector<128x128xbf16>, vector<16x128xf32> -> vector<16x128xf32>
    %cst_23 = arith.constant 0.000000e+00 : f32
    %28 = vector.broadcast %cst_23 : f32 to vector<16x128xf32>
    %29 = arith.maximumf %27, %28 : vector<16x128xf32>
    %30 = arith.truncf %29 : vector<16x128xf32> to vector<16x128xbf16>
    %c0_24 = arith.constant 0 : index
    %c0_25 = arith.constant 0 : index
    %31 = vector.load %arg8[%c0_24, %c0_25] : memref<128x128xbf16, #tpu.memory_space<vmem>>, vector<128x128xbf16>
    %cst_26 = arith.constant dense<0.000000e+00> : vector<16x128xf32>
    %32 = tpu.matmul %30, %31, %cst_26 {dimension_numbers = #tpu.dot_dimension_numbers<[1], [0], [0], [1], [0, 0, 1, 1], [], []>} : vector<16x128xbf16>, vector<128x128xbf16>, vector<16x128xf32> -> vector<16x128xf32>
    %c0_27 = arith.constant 0 : index
    %c0_28 = arith.constant 0 : index
    %33 = vector.load %arg9[%c0_27, %c0_28] : memref<16x128xf32, #tpu.memory_space<vmem>>, vector<16x128xf32>
    tpu.vector_store %arg9[%c0_27, %c0_28], %32 {strides = array<i32>} : memref<16x128xf32, #tpu.memory_space<vmem>>, vector<16x128xf32>,
    return
  }
  func.func @transform_0(%arg0: i32) -> (i32, i32) {
    %c0_i32 = arith.constant 0 : i32
    %c0_i32_0 = arith.constant 0 : i32
    return %arg0, %c0_i32 : i32, i32
  }
  func.func @transform_1(%arg0: i32) -> (i32, i32) {
    %c0_i32 = arith.constant 0 : i32
    %c0_i32_0 = arith.constant 0 : i32
    %c0_i32_1 = arith.constant 0 : i32
    return %c0_i32, %c0_i32_0 : i32, i32
  }
  func.func @transform_2(%arg0: i32) -> (i32, i32) {
    %c0_i32 = arith.constant 0 : i32
    %c0_i32_0 = arith.constant 0 : i32
    %c0_i32_1 = arith.constant 0 : i32
    return %c0_i32, %c0_i32_0 : i32, i32
  }
  func.func @transform_3(%arg0: i32) -> (i32, i32) {
    %c0_i32 = arith.constant 0 : i32
    %c0_i32_0 = arith.constant 0 : i32
    %c0_i32_1 = arith.constant 0 : i32
    return %c0_i32, %c0_i32_0 : i32, i32
  }
  func.func @transform_4(%arg0: i32) -> (i32, i32) {
    %c0_i32 = arith.constant 0 : i32
    %c0_i32_0 = arith.constant 0 : i32
    %c0_i32_1 = arith.constant 0 : i32
    return %c0_i32, %c0_i32_0 : i32, i32
  }
  func.func @transform_5(%arg0: i32) -> (i32, i32) {
    %c0_i32 = arith.constant 0 : i32
    %c0_i32_0 = arith.constant 0 : i32
    %c0_i32_1 = arith.constant 0 : i32
    return %c0_i32, %c0_i32_0 : i32, i32
  }
  func.func @transform_6(%arg0: i32) -> (i32, i32) {
    %c0_i32 = arith.constant 0 : i32
    %c0_i32_0 = arith.constant 0 : i32
    %c0_i32_1 = arith.constant 0 : i32
    return %c0_i32, %c0_i32_0 : i32, i32
  }
  func.func @transform_7(%arg0: i32) -> (i32, i32) {
    %c0_i32 = arith.constant 0 : i32
    %c0_i32_0 = arith.constant 0 : i32
    %c0_i32_1 = arith.constant 0 : i32
    return %c0_i32, %c0_i32_0 : i32, i32
  }
  func.func @transform_8(%arg0: i32) -> (i32, i32) {
    %c0_i32 = arith.constant 0 : i32
    %c0_i32_0 = arith.constant 0 : i32
    return %arg0, %c0_i32 : i32, i32
  }
}

</mosaic_0001>

<llo_original>
// kernel: tpu_custom_call.1
$region0: #{tpu_custom_call.1}
  #allocation0 [shape = 'u32[]', space=smem, size = 0x4, offset = 0x4, fixed_abs, tag = 'smem constant byte address 0x4 - core index']
  #allocation1 [shape = 'u32[144,128]{1,0:T(1,128)}', space=vmem, size = 0x12000, scoped, tag = 'internal scratch']
  %s0 = inlined_call_operand.hbm [shape: bf16[16,640], index: 0, kind: input, shape index: {}]
  %s1 = inlined_call_operand.hbm [shape: bf16[640,256], index: 1, kind: input, shape index: {}]
  %s2 = inlined_call_operand.hbm [shape: bf16[256,256], index: 2, kind: input, shape index: {}]
  %s3 = inlined_call_operand.hbm [shape: bf16[256,256], index: 3, kind: input, shape index: {}]
  %s4 = inlined_call_operand.hbm [shape: bf16[256,128], index: 4, kind: input, shape index: {}]
  %s5 = inlined_call_operand.hbm [shape: bf16[128,128], index: 5, kind: input, shape index: {}]
  %s6 = inlined_call_operand.hbm [shape: bf16[128,128], index: 6, kind: input, shape index: {}]
  %s7 = inlined_call_operand.hbm [shape: bf16[128,128], index: 7, kind: input, shape index: {}]
  %s8 = inlined_call_operand.hbm [shape: f32[16,128], index: 8, kind: output, shape index: {}]
  %s9 = sld [smem:[#allocation0]]
  $region74: #{tpu_custom_call.1} parent=0
    _
  %s11 = ssub.s32 1, %s9
  %s12 = scalar_select 0, %s11, %s9
  $region1: #{tpu_custom_call.1} parent=0
    #allocation2 [shape = 'u8[20480]{0}', space=vmem, size = 0x5000, scoped, tag = 'input window, operand 0, single buffered']
    #allocation3 [shape = 's32[1]{0}', space=sflag, size = 0x4, scoped, tag = 'scoped memory for tpu_custom_call.1']
    #allocation4 [shape = 's32[1]{0}', space=sflag, size = 0x4, scoped, tag = 'scoped memory for tpu_custom_call.1']
    #allocation5 [shape = 'u8[327680]{0}', space=vmem, size = 0x50000, scoped, tag = 'input window, operand 1, single buffered']
    #allocation6 [shape = 's32[1]{0}', space=sflag, size = 0x4, scoped, tag = 'scoped memory for tpu_custom_call.1']
    #allocation7 [shape = 'u8[131072]{0}', space=vmem, size = 0x20000, scoped, tag = 'input window, operand 2, single buffered']
    #allocation8 [shape = 'u8[131072]{0}', space=vmem, size = 0x20000, scoped, tag = 'input window, operand 3, single buffered']
    #allocation9 [shape = 's32[1]{0}', space=sflag, size = 0x4, scoped, tag = 'scoped memory for tpu_custom_call.1']
    #allocation10 [shape = 'u8[65536]{0}', space=vmem, size = 0x10000, scoped, tag = 'input window, operand 4, single buffered']
    #allocation11 [shape = 'u8[32768]{0}', space=vmem, size = 0x8000, scoped, tag = 'input window, operand 5, single buffered']
    #allocation12 [shape = 's32[1]{0}', space=sflag, size = 0x4, scoped, tag = 'scoped memory for tpu_custom_call.1']
    #allocation13 [shape = 'u8[32768]{0}', space=vmem, size = 0x8000, scoped, tag = 'input window, operand 6, single buffered']
    #allocation14 [shape = 'u8[32768]{0}', space=vmem, size = 0x8000, scoped, tag = 'input window, operand 7, single buffered']
    #allocation15 [shape = 's32[1]{0}', space=sflag, size = 0x4, scoped, tag = 'scoped memory for tpu_custom_call.1']
    #allocation16 [shape = 'u8[8192]{0}', space=vmem, size = 0x2000, scoped, tag = 'output window, operand 0, single buffered']
    %13 = vsyncpa [#allocation3], 0
    %14 = vsyncpa [#allocation6], 0
    %15 = vsyncpa [#allocation9], 0
    %16 = vsyncpa [#allocation12], 0
    %17 = vsyncpa [#allocation15], 0
    %18 = vsyncpa [#allocation4], 0
    // Predicated region
    $region2: #{tpu_custom_call.1} parent=1 // pred_check
      _
    $region3: #{tpu_custom_call.1} parent=1 // pred_check_branch
      %20 = sbr.rel (0) target = $region5
    $region4: #{tpu_custom_call.1} parent=1 // pred_region
      %s22 = ssub.s32 640, 640
      %23 = vsyncadd [#allocation3], %s22
      %s24 = sshll.u32 [#allocation2], 4
      %s25 = int_to_ptr.vmem [resolvable:$true] %s24
      %30 = dma.hbm_to_vmem [thread:$0]  %s0, 640, %s25, [#allocation3], 320, 320, 20
    $region5: #{tpu_custom_call.1} parent=1 // pred_fallthru
      _
    // Predicated region
    $region6: #{tpu_custom_call.1} parent=1 // pred_check
      _
    $region7: #{tpu_custom_call.1} parent=1 // pred_check_branch
      %32 = sbr.rel (0) target = $region9
    $region8: #{tpu_custom_call.1} parent=1 // pred_region
      %s34 = ssub.s32 10240, 10240
      %35 = vsyncadd [#allocation6], %s34
      %s36 = sshll.u32 [#allocation5], 4
      %s37 = int_to_ptr.vmem [resolvable:$true] %s36
      %42 = dma.hbm_to_vmem [thread:$0]  %s1, 10240, %s37, [#allocation6], 128, 128, 8
    $region9: #{tpu_custom_call.1} parent=1 // pred_fallthru
      _
    // Predicated region
    $region10: #{tpu_custom_call.1} parent=1 // pred_check
      _
    $region11: #{tpu_custom_call.1} parent=1 // pred_check_branch
      %44 = sbr.rel (0) target = $region13
    $region12: #{tpu_custom_call.1} parent=1 // pred_region
      %s46 = ssub.s32 4096, 4096
      %47 = vsyncadd [#allocation6], %s46
      %s48 = sshll.u32 [#allocation7], 4
      %s49 = int_to_ptr.vmem [resolvable:$true] %s48
      %54 = dma.hbm_to_vmem [thread:$0]  %s2, 4096, %s49, [#allocation6], 128, 128, 8
    $region13: #{tpu_custom_call.1} parent=1 // pred_fallthru
      _
    // Predicated region
    $region14: #{tpu_custom_call.1} parent=1 // pred_check
      _
    $region15: #{tpu_custom_call.1} parent=1 // pred_check_branch
      %56 = sbr.rel (0) target = $region17
    $region16: #{tpu_custom_call.1} parent=1 // pred_region
      %s58 = ssub.s32 4096, 4096
      %59 = vsyncadd [#allocation9], %s58
      %s60 = sshll.u32 [#allocation8], 4
      %s61 = int_to_ptr.vmem [resolvable:$true] %s60
      %66 = dma.hbm_to_vmem [thread:$0]  %s3, 4096, %s61, [#allocation9], 128, 128, 8
    $region17: #{tpu_custom_call.1} parent=1 // pred_fallthru
      _
    // Predicated region
    $region18: #{tpu_custom_call.1} parent=1 // pred_check
      _
    $region19: #{tpu_custom_call.1} parent=1 // pred_check_branch
      %68 = sbr.rel (0) target = $region21
    $region20: #{tpu_custom_call.1} parent=1 // pred_region
      %s70 = ssub.s32 2048, 2048
      %71 = vsyncadd [#allocation9], %s70
      %s72 = sshll.u32 [#allocation10], 4
      %s73 = int_to_ptr.vmem [resolvable:$true] %s72
      %78 = dma.hbm_to_vmem [thread:$0]  %s4, 2048, %s73, [#allocation9], 64, 64, 4
    $region21: #{tpu_custom_call.1} parent=1 // pred_fallthru
      _
    // Predicated region
    $region22: #{tpu_custom_call.1} parent=1 // pred_check
      _
    $region23: #{tpu_custom_call.1} parent=1 // pred_check_branch
      %80 = sbr.rel (0) target = $region25
    $region24: #{tpu_custom_call.1} parent=1 // pred_region
      %s82 = ssub.s32 1024, 1024
      %83 = vsyncadd [#allocation12], %s82
      %s84 = sshll.u32 [#allocation11], 4
      %s85 = int_to_ptr.vmem [resolvable:$true] %s84
      %90 = dma.hbm_to_vmem [thread:$0]  %s5, 1024, %s85, [#allocation12], 64, 64, 4
    $region25: #{tpu_custom_call.1} parent=1 // pred_fallthru
      _
    // Predicated region
    $region26: #{tpu_custom_call.1} parent=1 // pred_check
      _
    $region27: #{tpu_custom_call.1} parent=1 // pred_check_branch
      %92 = sbr.rel (0) target = $region29
    $region28: #{tpu_custom_call.1} parent=1 // pred_region
      %s94 = ssub.s32 1024, 1024
      %95 = vsyncadd [#allocation12], %s94
      %s96 = sshll.u32 [#allocation13], 4
      %s97 = int_to_ptr.vmem [resolvable:$true] %s96
      %102 = dma.hbm_to_vmem [thread:$0]  %s6, 1024, %s97, [#allocation12], 64, 64, 4
    $region29: #{tpu_custom_call.1} parent=1 // pred_fallthru
      _
    // Predicated region
    $region30: #{tpu_custom_call.1} parent=1 // pred_check
      _
    $region31: #{tpu_custom_call.1} parent=1 // pred_check_branch
      %104 = sbr.rel (0) target = $region33
    $region32: #{tpu_custom_call.1} parent=1 // pred_region
      %s106 = ssub.s32 1024, 1024
      %107 = vsyncadd [#allocation15], %s106
      %s108 = sshll.u32 [#allocation14], 4
      %s109 = int_to_ptr.vmem [resolvable:$true] %s108
      %114 = dma.hbm_to_vmem [thread:$0]  %s7, 1024, %s109, [#allocation15], 64, 64, 4
    $region33: #{tpu_custom_call.1} parent=1 // pred_fallthru
      _
    // Predicated region
    $region34: #{tpu_custom_call.1} parent=1 // pred_check
      _
    $region35: #{tpu_custom_call.1} parent=1 // pred_check_branch
      %116 = sbr.rel (0) target = $region37
    $region36: #{tpu_custom_call.1} parent=1 // pred_region
      %117 = dma.done [#allocation3], 640
    $region37: #{tpu_custom_call.1} parent=1 // pred_fallthru
      _
    // Predicated region
    $region38: #{tpu_custom_call.1} parent=1 // pred_check
      _
    $region39: #{tpu_custom_call.1} parent=1 // pred_check_branch
      %119 = sbr.rel (0) target = $region41
    $region40: #{tpu_custom_call.1} parent=1 // pred_region
      %120 = dma.done [#allocation6], 10240
    $region41: #{tpu_custom_call.1} parent=1 // pred_fallthru
      _
    // Predicated region
    $region42: #{tpu_custom_call.1} parent=1 // pred_check
      _
    $region43: #{tpu_custom_call.1} parent=1 // pred_check_branch
      %122 = sbr.rel (0) target = $region45
    $region44: #{tpu_custom_call.1} parent=1 // pred_region
      %123 = dma.done [#allocation6], 4096
    $region45: #{tpu_custom_call.1} parent=1 // pred_fallthru
      _
    // Predicated region
    $region46: #{tpu_custom_call.1} parent=1 // pred_check
      _
    $region47: #{tpu_custom_call.1} parent=1 // pred_check_branch
      %125 = sbr.rel (0) target = $region49
    $region48: #{tpu_custom_call.1} parent=1 // pred_region
      %126 = dma.done [#allocation9], 4096
    $region49: #{tpu_custom_call.1} parent=1 // pred_fallthru
      _
    // Predicated region
    $region50: #{tpu_custom_call.1} parent=1 // pred_check
      _
    $region51: #{tpu_custom_call.1} parent=1 // pred_check_branch
      %128 = sbr.rel (0) target = $region53
    $region52: #{tpu_custom_call.1} parent=1 // pred_region
      %129 = dma.done [#allocation9], 2048
    $region53: #{tpu_custom_call.1} parent=1 // pred_fallthru
      _
    // Predicated region
    $region54: #{tpu_custom_call.1} parent=1 // pred_check
      _
    $region55: #{tpu_custom_call.1} parent=1 // pred_check_branch
      %131 = sbr.rel (0) target = $region57
    $region56: #{tpu_custom_call.1} parent=1 // pred_region
      %132 = dma.done [#allocation12], 1024
    $region57: #{tpu_custom_call.1} parent=1 // pred_fallthru
      _
    // Predicated region
    $region58: #{tpu_custom_call.1} parent=1 // pred_check
      _
    $region59: #{tpu_custom_call.1} parent=1 // pred_check_branch
      %134 = sbr.rel (0) target = $region61
    $region60: #{tpu_custom_call.1} parent=1 // pred_region
      %135 = dma.done [#allocation12], 1024
    $region61: #{tpu_custom_call.1} parent=1 // pred_fallthru
      _
    // Predicated region
    $region62: #{tpu_custom_call.1} parent=1 // pred_check
      _
    $region63: #{tpu_custom_call.1} parent=1 // pred_check_branch
      %137 = sbr.rel (0) target = $region65
    $region64: #{tpu_custom_call.1} parent=1 // pred_region
      %138 = dma.done [#allocation15], 1024
    $region65: #{tpu_custom_call.1} parent=1 // pred_fallthru
      _
    %v140 = vld [vmem:[#allocation2] sm:$0xff]
    %v141 = vld [vmem:[#allocation2 + $0x8] sm:$0xff]
    %v142 = vld [vmem:[#allocation2 + $0x10] sm:$0xf]
    %v143 = vld [vmem:[#allocation2 + $0x14] sm:$0xff]
    %v144 = vld [vmem:[#allocation2 + $0x1c] sm:$0xff]
    %v145 = vld [vmem:[#allocation2 + $0x24] sm:$0xf]
    %v146 = vld [vmem:[#allocation5] sm:$0xff]
    %v147 = vld [vmem:[#allocation5 + $0x8] sm:$0xff]
    %v148 = vld [vmem:[#allocation5 + $0x10] sm:$0xff]
    %v149 = vld [vmem:[#allocation5 + $0x18] sm:$0xff]
    %v150 = vld [vmem:[#allocation5 + $0x20] sm:$0xff]
    %v151 = vld [vmem:[#allocation5 + $0x28] sm:$0xff]
    %v152 = vld [vmem:[#allocation5 + $0x30] sm:$0xff]
    %v153 = vld [vmem:[#allocation5 + $0x38] sm:$0xff]
    %v154 = vld [vmem:[#allocation5 + $0x40] sm:$0xff]
    %v155 = vld [vmem:[#allocation5 + $0x48] sm:$0xff]
    %v156 = vld [vmem:[#allocation5 + $0x50] sm:$0xff]
    %v157 = vld [vmem:[#allocation5 + $0x58] sm:$0xff]
    %v158 = vld [vmem:[#allocation5 + $0x60] sm:$0xff]
    %v159 = vld [vmem:[#allocation5 + $0x68] sm:$0xff]
    %v160 = vld [vmem:[#allocation5 + $0x70] sm:$0xff]
    %v161 = vld [vmem:[#allocation5 + $0x78] sm:$0xff]
    %v162 = vld [vmem:[#allocation5 + $0x80] sm:$0xff]
    %v163 = vld [vmem:[#allocation5 + $0x88] sm:$0xff]
    %v164 = vld [vmem:[#allocation5 + $0x90] sm:$0xff]
    %v165 = vld [vmem:[#allocation5 + $0x98] sm:$0xff]
    %v166 = vld [vmem:[#allocation5 + $0xa0] sm:$0xff]
    %v167 = vld [vmem:[#allocation5 + $0xa8] sm:$0xff]
    %v168 = vld [vmem:[#allocation5 + $0xb0] sm:$0xff]
    %v169 = vld [vmem:[#allocation5 + $0xb8] sm:$0xff]
    %v170 = vld [vmem:[#allocation5 + $0xc0] sm:$0xff]
    %v171 = vld [vmem:[#allocation5 + $0xc8] sm:$0xff]
    %v172 = vld [vmem:[#allocation5 + $0xd0] sm:$0xff]
    %v173 = vld [vmem:[#allocation5 + $0xd8] sm:$0xff]
    %v174 = vld [vmem:[#allocation5 + $0xe0] sm:$0xff]
    %v175 = vld [vmem:[#allocation5 + $0xe8] sm:$0xff]
    %v176 = vld [vmem:[#allocation5 + $0xf0] sm:$0xff]
    %v177 = vld [vmem:[#allocation5 + $0xf8] sm:$0xff]
    %v178 = vld [vmem:[#allocation5 + $0x100] sm:$0xff]
    %v179 = vld [vmem:[#allocation5 + $0x108] sm:$0xff]
    %v180 = vld [vmem:[#allocation5 + $0x110] sm:$0xff]
    %v181 = vld [vmem:[#allocation5 + $0x118] sm:$0xff]
    %v182 = vld [vmem:[#allocation5 + $0x120] sm:$0xff]
    %v183 = vld [vmem:[#allocation5 + $0x128] sm:$0xff]
    %v184 = vld [vmem:[#allocation5 + $0x130] sm:$0xff]
    %v185 = vld [vmem:[#allocation5 + $0x138] sm:$0xff]
    %v186 = vld [vmem:[#allocation5 + $0x140] sm:$0xff]
    %v187 = vld [vmem:[#allocation5 + $0x148] sm:$0xff]
    %v188 = vld [vmem:[#allocation5 + $0x150] sm:$0xff]
    %v189 = vld [vmem:[#allocation5 + $0x158] sm:$0xff]
    %v190 = vld [vmem:[#allocation5 + $0x160] sm:$0xff]
    %v191 = vld [vmem:[#allocation5 + $0x168] sm:$0xff]
    %v192 = vld [vmem:[#allocation5 + $0x170] sm:$0xff]
    %v193 = vld [vmem:[#allocation5 + $0x178] sm:$0xff]
    %v194 = vld [vmem:[#allocation5 + $0x180] sm:$0xff]
    %v195 = vld [vmem:[#allocation5 + $0x188] sm:$0xff]
    %v196 = vld [vmem:[#allocation5 + $0x190] sm:$0xff]
    %v197 = vld [vmem:[#allocation5 + $0x198] sm:$0xff]
    %v198 = vld [vmem:[#allocation5 + $0x1a0] sm:$0xff]
    %v199 = vld [vmem:[#allocation5 + $0x1a8] sm:$0xff]
    %v200 = vld [vmem:[#allocation5 + $0x1b0] sm:$0xff]
    %v201 = vld [vmem:[#allocation5 + $0x1b8] sm:$0xff]
    %v202 = vld [vmem:[#allocation5 + $0x1c0] sm:$0xff]
    %v203 = vld [vmem:[#allocation5 + $0x1c8] sm:$0xff]
    %v204 = vld [vmem:[#allocation5 + $0x1d0] sm:$0xff]
    %v205 = vld [vmem:[#allocation5 + $0x1d8] sm:$0xff]
    %v206 = vld [vmem:[#allocation5 + $0x1e0] sm:$0xff]
    %v207 = vld [vmem:[#allocation5 + $0x1e8] sm:$0xff]
    %v208 = vld [vmem:[#allocation5 + $0x1f0] sm:$0xff]
    %v209 = vld [vmem:[#allocation5 + $0x1f8] sm:$0xff]
    %v210 = vld [vmem:[#allocation5 + $0x200] sm:$0xff]
    %v211 = vld [vmem:[#allocation5 + $0x208] sm:$0xff]
    %v212 = vld [vmem:[#allocation5 + $0x210] sm:$0xff]
    %v213 = vld [vmem:[#allocation5 + $0x218] sm:$0xff]
    %v214 = vld [vmem:[#allocation5 + $0x220] sm:$0xff]
    %v215 = vld [vmem:[#allocation5 + $0x228] sm:$0xff]
    %v216 = vld [vmem:[#allocation5 + $0x230] sm:$0xff]
    %v217 = vld [vmem:[#allocation5 + $0x238] sm:$0xff]
    %v218 = vld [vmem:[#allocation5 + $0x240] sm:$0xff]
    %v219 = vld [vmem:[#allocation5 + $0x248] sm:$0xff]
    %v220 = vld [vmem:[#allocation5 + $0x250] sm:$0xff]
    %v221 = vld [vmem:[#allocation5 + $0x258] sm:$0xff]
    %v222 = vld [vmem:[#allocation5 + $0x260] sm:$0xff]
    %v223 = vld [vmem:[#allocation5 + $0x268] sm:$0xff]
    %v224 = vld [vmem:[#allocation5 + $0x270] sm:$0xff]
    %v225 = vld [vmem:[#allocation5 + $0x278] sm:$0xff]
    %v232 = vunpack.c.l.b16 %v140
    %v233 = vunpack.c.h.b16 %v140
    %v234 = vunpack.c.l.b16 %v141
    %v235 = vunpack.c.h.b16 %v141
    %v236 = vunpack.c.l.b16 %v142
    %v237 = vunpack.c.l.b16 %v143
    %v238 = vunpack.c.h.b16 %v143
    %v239 = vunpack.c.l.b16 %v144
    %v240 = vunpack.c.h.b16 %v144
    %v241 = vunpack.c.l.b16 %v145
    %v242 = vpack.c.b16 %v237, %v232
    %v243 = vpack.c.b16 %v238, %v233
    %v244 = vpack.c.b16 %v239, %v234
    %v245 = vpack.c.b16 %v240, %v235
    %v246 = vpack.c.b16 %v241, %v236
    %v332 = vunpack.c.l.b16 %v146
    %v333 = vunpack.c.h.b16 %v146
    %v334 = vunpack.c.l.b16 %v147
    %v335 = vunpack.c.h.b16 %v147
    %v336 = vunpack.c.l.b16 %v148
    %v337 = vunpack.c.h.b16 %v148
    %v338 = vunpack.c.l.b16 %v149
    %v339 = vunpack.c.h.b16 %v149
    %v340 = vunpack.c.l.b16 %v150
    %v341 = vunpack.c.h.b16 %v150
    %v342 = vunpack.c.l.b16 %v151
    %v343 = vunpack.c.h.b16 %v151
    %v344 = vunpack.c.l.b16 %v152
    %v345 = vunpack.c.h.b16 %v152
    %v346 = vunpack.c.l.b16 %v153
    %v347 = vunpack.c.h.b16 %v153
    %v348 = vunpack.c.l.b16 %v154
    %v349 = vunpack.c.h.b16 %v154
    %v350 = vunpack.c.l.b16 %v155
    %v351 = vunpack.c.h.b16 %v155
    %v352 = vunpack.c.l.b16 %v156
    %v353 = vunpack.c.h.b16 %v156
    %v354 = vunpack.c.l.b16 %v157
    %v355 = vunpack.c.h.b16 %v157
    %v356 = vunpack.c.l.b16 %v158
    %v357 = vunpack.c.h.b16 %v158
    %v358 = vunpack.c.l.b16 %v159
    %v359 = vunpack.c.h.b16 %v159
    %v360 = vunpack.c.l.b16 %v160
    %v361 = vunpack.c.h.b16 %v160
    %v362 = vunpack.c.l.b16 %v161
    %v363 = vunpack.c.h.b16 %v161
    %v364 = vunpack.c.l.b16 %v162
    %v365 = vunpack.c.h.b16 %v162
    %v366 = vunpack.c.l.b16 %v163
    %v367 = vunpack.c.h.b16 %v163
    %v368 = vunpack.c.l.b16 %v164
    %v369 = vunpack.c.h.b16 %v164
    %v370 = vunpack.c.l.b16 %v165
    %v371 = vunpack.c.h.b16 %v165
    %v372 = vunpack.c.l.b16 %v166
    %v373 = vunpack.c.h.b16 %v166
    %v374 = vunpack.c.l.b16 %v167
    %v375 = vunpack.c.h.b16 %v167
    %v376 = vunpack.c.l.b16 %v168
    %v377 = vunpack.c.h.b16 %v168
    %v378 = vunpack.c.l.b16 %v169
    %v379 = vunpack.c.h.b16 %v169
    %v380 = vunpack.c.l.b16 %v170
    %v381 = vunpack.c.h.b16 %v170
    %v382 = vunpack.c.l.b16 %v171
    %v383 = vunpack.c.h.b16 %v171
    %v384 = vunpack.c.l.b16 %v172
    %v385 = vunpack.c.h.b16 %v172
    %v386 = vunpack.c.l.b16 %v173
    %v387 = vunpack.c.h.b16 %v173
    %v388 = vunpack.c.l.b16 %v174
    %v389 = vunpack.c.h.b16 %v174
    %v390 = vunpack.c.l.b16 %v175
    %v391 = vunpack.c.h.b16 %v175
    %v392 = vunpack.c.l.b16 %v176
    %v393 = vunpack.c.h.b16 %v176
    %v394 = vunpack.c.l.b16 %v177
    %v395 = vunpack.c.h.b16 %v177
    %v396 = vunpack.c.l.b16 %v178
    %v397 = vunpack.c.h.b16 %v178
    %v398 = vunpack.c.l.b16 %v179
    %v399 = vunpack.c.h.b16 %v179
    %v400 = vunpack.c.l.b16 %v180
    %v401 = vunpack.c.h.b16 %v180
    %v402 = vunpack.c.l.b16 %v181
    %v403 = vunpack.c.h.b16 %v181
    %v404 = vunpack.c.l.b16 %v182
    %v405 = vunpack.c.h.b16 %v182
    %v406 = vunpack.c.l.b16 %v183
    %v407 = vunpack.c.h.b16 %v183
    %v408 = vunpack.c.l.b16 %v184
    %v409 = vunpack.c.h.b16 %v184
    %v410 = vunpack.c.l.b16 %v185
    %v411 = vunpack.c.h.b16 %v185
    %v412 = vunpack.c.l.b16 %v186
    %v413 = vunpack.c.h.b16 %v186
    %v414 = vunpack.c.l.b16 %v187
    %v415 = vunpack.c.h.b16 %v187
    %v416 = vunpack.c.l.b16 %v188
    %v417 = vunpack.c.h.b16 %v188
    %v418 = vunpack.c.l.b16 %v189
    %v419 = vunpack.c.h.b16 %v189
    %v420 = vunpack.c.l.b16 %v190
    %v421 = vunpack.c.h.b16 %v190
    %v422 = vunpack.c.l.b16 %v191
    %v423 = vunpack.c.h.b16 %v191
    %v424 = vunpack.c.l.b16 %v192
    %v425 = vunpack.c.h.b16 %v192
    %v426 = vunpack.c.l.b16 %v193
    %v427 = vunpack.c.h.b16 %v193
    %v428 = vunpack.c.l.b16 %v194
    %v429 = vunpack.c.h.b16 %v194
    %v430 = vunpack.c.l.b16 %v195
    %v431 = vunpack.c.h.b16 %v195
    %v432 = vunpack.c.l.b16 %v196
    %v433 = vunpack.c.h.b16 %v196
    %v434 = vunpack.c.l.b16 %v197
    %v435 = vunpack.c.h.b16 %v197
    %v436 = vunpack.c.l.b16 %v198
    %v437 = vunpack.c.h.b16 %v198
    %v438 = vunpack.c.l.b16 %v199
    %v439 = vunpack.c.h.b16 %v199
    %v440 = vunpack.c.l.b16 %v200
    %v441 = vunpack.c.h.b16 %v200
    %v442 = vunpack.c.l.b16 %v201
    %v443 = vunpack.c.h.b16 %v201
    %v444 = vunpack.c.l.b16 %v202
    %v445 = vunpack.c.h.b16 %v202
    %v446 = vunpack.c.l.b16 %v203
    %v447 = vunpack.c.h.b16 %v203
    %v448 = vunpack.c.l.b16 %v204
    %v449 = vunpack.c.h.b16 %v204
    %v450 = vunpack.c.l.b16 %v205
    %v451 = vunpack.c.h.b16 %v205
    %v452 = vunpack.c.l.b16 %v206
    %v453 = vunpack.c.h.b16 %v206
    %v454 = vunpack.c.l.b16 %v207
    %v455 = vunpack.c.h.b16 %v207
    %v456 = vunpack.c.l.b16 %v208
    %v457 = vunpack.c.h.b16 %v208
    %v458 = vunpack.c.l.b16 %v209
    %v459 = vunpack.c.h.b16 %v209
    %v460 = vunpack.c.l.b16 %v210
    %v461 = vunpack.c.h.b16 %v210
    %v462 = vunpack.c.l.b16 %v211
    %v463 = vunpack.c.h.b16 %v211
    %v464 = vunpack.c.l.b16 %v212
    %v465 = vunpack.c.h.b16 %v212
    %v466 = vunpack.c.l.b16 %v213
    %v467 = vunpack.c.h.b16 %v213
    %v468 = vunpack.c.l.b16 %v214
    %v469 = vunpack.c.h.b16 %v214
    %v470 = vunpack.c.l.b16 %v215
    %v471 = vunpack.c.h.b16 %v215
    %v472 = vunpack.c.l.b16 %v216
    %v473 = vunpack.c.h.b16 %v216
    %v474 = vunpack.c.l.b16 %v217
    %v475 = vunpack.c.h.b16 %v217
    %v476 = vunpack.c.l.b16 %v218
    %v477 = vunpack.c.h.b16 %v218
    %v478 = vunpack.c.l.b16 %v219
    %v479 = vunpack.c.h.b16 %v219
    %v480 = vunpack.c.l.b16 %v220
    %v481 = vunpack.c.h.b16 %v220
    %v482 = vunpack.c.l.b16 %v221
    %v483 = vunpack.c.h.b16 %v221
    %v484 = vunpack.c.l.b16 %v222
    %v485 = vunpack.c.h.b16 %v222
    %v486 = vunpack.c.l.b16 %v223
    %v487 = vunpack.c.h.b16 %v223
    %v488 = vunpack.c.l.b16 %v224
    %v489 = vunpack.c.h.b16 %v224
    %v490 = vunpack.c.l.b16 %v225
    %v491 = vunpack.c.h.b16 %v225
    %v492 = vpack.c.b16 %v334, %v332
    %v493 = vpack.c.b16 %v335, %v333
    %v494 = vpack.c.b16 %v338, %v336
    %v495 = vpack.c.b16 %v339, %v337
    %v496 = vpack.c.b16 %v342, %v340
    %v497 = vpack.c.b16 %v343, %v341
    %v498 = vpack.c.b16 %v346, %v344
    %v499 = vpack.c.b16 %v347, %v345
    %v500 = vpack.c.b16 %v350, %v348
    %v501 = vpack.c.b16 %v351, %v349
    %v502 = vpack.c.b16 %v354, %v352
    %v503 = vpack.c.b16 %v355, %v353
    %v504 = vpack.c.b16 %v358, %v356
    %v505 = vpack.c.b16 %v359, %v357
    %v506 = vpack.c.b16 %v362, %v360
    %v507 = vpack.c.b16 %v363, %v361
    %v508 = vpack.c.b16 %v366, %v364
    %v509 = vpack.c.b16 %v367, %v365
    %v510 = vpack.c.b16 %v370, %v368
    %v511 = vpack.c.b16 %v371, %v369
    %v512 = vpack.c.b16 %v374, %v372
    %v513 = vpack.c.b16 %v375, %v373
    %v514 = vpack.c.b16 %v378, %v376
    %v515 = vpack.c.b16 %v379, %v377
    %v516 = vpack.c.b16 %v382, %v380
    %v517 = vpack.c.b16 %v383, %v381
    %v518 = vpack.c.b16 %v386, %v384
    %v519 = vpack.c.b16 %v387, %v385
    %v520 = vpack.c.b16 %v390, %v388
    %v521 = vpack.c.b16 %v391, %v389
    %v522 = vpack.c.b16 %v394, %v392
    %v523 = vpack.c.b16 %v395, %v393
    %v524 = vpack.c.b16 %v398, %v396
    %v525 = vpack.c.b16 %v399, %v397
    %v526 = vpack.c.b16 %v402, %v400
    %v527 = vpack.c.b16 %v403, %v401
    %v528 = vpack.c.b16 %v406, %v404
    %v529 = vpack.c.b16 %v407, %v405
    %v530 = vpack.c.b16 %v410, %v408
    %v531 = vpack.c.b16 %v411, %v409
    %v532 = vpack.c.b16 %v414, %v412
    %v533 = vpack.c.b16 %v415, %v413
    %v534 = vpack.c.b16 %v418, %v416
    %v535 = vpack.c.b16 %v419, %v417
    %v536 = vpack.c.b16 %v422, %v420
    %v537 = vpack.c.b16 %v423, %v421
    %v538 = vpack.c.b16 %v426, %v424
    %v539 = vpack.c.b16 %v427, %v425
    %v540 = vpack.c.b16 %v430, %v428
    %v541 = vpack.c.b16 %v431, %v429
    %v542 = vpack.c.b16 %v434, %v432
    %v543 = vpack.c.b16 %v435, %v433
    %v544 = vpack.c.b16 %v438, %v436
    %v545 = vpack.c.b16 %v439, %v437
    %v546 = vpack.c.b16 %v442, %v440
    %v547 = vpack.c.b16 %v443, %v441
    %v548 = vpack.c.b16 %v446, %v444
    %v549 = vpack.c.b16 %v447, %v445
    %v550 = vpack.c.b16 %v450, %v448
    %v551 = vpack.c.b16 %v451, %v449
    %v552 = vpack.c.b16 %v454, %v452
    %v553 = vpack.c.b16 %v455, %v453
    %v554 = vpack.c.b16 %v458, %v456
    %v555 = vpack.c.b16 %v459, %v457
    %v556 = vpack.c.b16 %v462, %v460
    %v557 = vpack.c.b16 %v463, %v461
    %v558 = vpack.c.b16 %v466, %v464
    %v559 = vpack.c.b16 %v467, %v465
    %v560 = vpack.c.b16 %v470, %v468
    %v561 = vpack.c.b16 %v471, %v469
    %v562 = vpack.c.b16 %v474, %v472
    %v563 = vpack.c.b16 %v475, %v473
    %v564 = vpack.c.b16 %v478, %v476
    %v565 = vpack.c.b16 %v479, %v477
    %v566 = vpack.c.b16 %v482, %v480
    %v567 = vpack.c.b16 %v483, %v481
    %v568 = vpack.c.b16 %v486, %v484
    %v569 = vpack.c.b16 %v487, %v485
    %v570 = vpack.c.b16 %v490, %v488
    %v571 = vpack.c.b16 %v491, %v489
    %652 = vmatprep.subr.bf16.mxu0 %v493
    %653 = vmatpush1.bf16.msra.mxu0 %v492
    %654 = vmatprep.subr.bf16.mxu0 %v495
    %655 = vmatpush1.bf16.msra.mxu0 %v494
    %656 = vmatprep.subr.bf16.mxu0 %v497
    %657 = vmatpush1.bf16.msra.mxu0 %v496
    %658 = vmatprep.subr.bf16.mxu0 %v499
    %659 = vmatpush1.bf16.msra.mxu0 %v498
    %660 = vmatprep.subr.bf16.mxu0 %v501
    %661 = vmatpush1.bf16.msra.mxu0 %v500
    %662 = vmatprep.subr.bf16.mxu0 %v503
    %663 = vmatpush1.bf16.msra.mxu0 %v502
    %664 = vmatprep.subr.bf16.mxu0 %v505
    %665 = vmatpush1.bf16.msra.mxu0 %v504
    %666 = vmatprep.subr.bf16.mxu0 %v507
    %667 = vmatpush1.bf16.msra.mxu0 %v506
    %668 = vmatprep.subr.bf16.mxu0 %v509
    %669 = vmatpush1.bf16.msra.mxu0 %v508
    %670 = vmatprep.subr.bf16.mxu0 %v511
    %671 = vmatpush1.bf16.msra.mxu0 %v510
    %672 = vmatprep.subr.bf16.mxu0 %v513
    %673 = vmatpush1.bf16.msra.mxu0 %v512
    %674 = vmatprep.subr.bf16.mxu0 %v515
    %675 = vmatpush1.bf16.msra.mxu0 %v514
    %676 = vmatprep.subr.bf16.mxu0 %v517
    %677 = vmatpush1.bf16.msra.mxu0 %v516
    %678 = vmatprep.subr.bf16.mxu0 %v519
    %679 = vmatpush1.bf16.msra.mxu0 %v518
    %680 = vmatprep.subr.bf16.mxu0 %v521
    %681 = vmatpush1.bf16.msra.mxu0 %v520
    %682 = vmatprep.subr.bf16.mxu0 %v523
    %683 = vmatpush1.bf16.msra.mxu0 %v522
    %684 = vmatprep.mubr.bf16.mxu0 %v243
    %685 = vmatmul.mubr.bf16.gmra.mrb[0].mxu0 %v242
    %v686 = vpop.f32.mrb[0].mxu0
    %v687 = vadd.f32 0.0, %v686
    %v688 = vpop.f32.mrb[0].mxu0
    %v689 = vadd.f32 0.0, %v688
    %v690 = vpop.f32.mrb[0].mxu0
    %v691 = vadd.f32 0.0, %v690
    %v692 = vpop.f32.mrb[0].mxu0
    %v693 = vadd.f32 0.0, %v692
    %694 = vdwg.mxu0
    %695 = vmatprep.subr.bf16.mxu0 %v525
    %696 = vmatpush1.bf16.msra.mxu0 %v524
    %697 = vmatprep.subr.bf16.mxu0 %v527
    %698 = vmatpush1.bf16.msra.mxu0 %v526
    %699 = vmatprep.subr.bf16.mxu0 %v529
    %700 = vmatpush1.bf16.msra.mxu0 %v528
    %701 = vmatprep.subr.bf16.mxu0 %v531
    %702 = vmatpush1.bf16.msra.mxu0 %v530
    %703 = vmatprep.subr.bf16.mxu0 %v533
    %704 = vmatpush1.bf16.msra.mxu0 %v532
    %705 = vmatprep.subr.bf16.mxu0 %v535
    %706 = vmatpush1.bf16.msra.mxu0 %v534
    %707 = vmatprep.subr.bf16.mxu0 %v537
    %708 = vmatpush1.bf16.msra.mxu0 %v536
    %709 = vmatprep.subr.bf16.mxu0 %v539
    %710 = vmatpush1.bf16.msra.mxu0 %v538
    %711 = vmatprep.subr.bf16.mxu0 %v541
    %712 = vmatpush1.bf16.msra.mxu0 %v540
    %713 = vmatprep.subr.bf16.mxu0 %v543
    %714 = vmatpush1.bf16.msra.mxu0 %v542
    %715 = vmatprep.subr.bf16.mxu0 %v545
    %716 = vmatpush1.bf16.msra.mxu0 %v544
    %717 = vmatprep.subr.bf16.mxu0 %v547
    %718 = vmatpush1.bf16.msra.mxu0 %v546
    %719 = vmatprep.subr.bf16.mxu0 %v549
    %720 = vmatpush1.bf16.msra.mxu0 %v548
    %721 = vmatprep.subr.bf16.mxu0 %v551
    %722 = vmatpush1.bf16.msra.mxu0 %v550
    %723 = vmatprep.subr.bf16.mxu0 %v553
    %724 = vmatpush1.bf16.msra.mxu0 %v552
    %725 = vmatprep.subr.bf16.mxu0 %v555
    %726 = vmatpush1.bf16.msra.mxu0 %v554
    %727 = vmatprep.mubr.bf16.mxu0 %v245
    %728 = vmatmul.mubr.bf16.gmra.mrb[0].mxu0 %v244
    %v729 = vpop.f32.mrb[0].mxu0
    %v730 = vadd.f32 %v687, %v729
    %v731 = vpop.f32.mrb[0].mxu0
    %v732 = vadd.f32 %v689, %v731
    %v733 = vpop.f32.mrb[0].mxu0
    %v734 = vadd.f32 %v691, %v733
    %v735 = vpop.f32.mrb[0].mxu0
    %v736 = vadd.f32 %v693, %v735
    %737 = vdwg.mxu0
    %738 = vmatprep.subr.bf16.mxu0 %v557
    %739 = vmatpush1.bf16.msra.mxu0 %v556
    %740 = vmatprep.subr.bf16.mxu0 %v559
    %741 = vmatpush1.bf16.msra.mxu0 %v558
    %742 = vmatprep.subr.bf16.mxu0 %v561
    %743 = vmatpush1.bf16.msra.mxu0 %v560
    %744 = vmatprep.subr.bf16.mxu0 %v563
    %745 = vmatpush1.bf16.msra.mxu0 %v562
    %746 = vmatprep.subr.bf16.mxu0 %v565
    %747 = vmatpush1.bf16.msra.mxu0 %v564
    %748 = vmatprep.subr.bf16.mxu0 %v567
    %749 = vmatpush1.bf16.msra.mxu0 %v566
    %750 = vmatprep.subr.bf16.mxu0 %v569
    %751 = vmatpush1.bf16.msra.mxu0 %v568
    %752 = vmatprep.subr.bf16.mxu0 %v571
    %753 = vmatpush1.bf16.msra.mxu0 %v570
    %754 = vmatprep.subr.bf16.mxu0 0
    %755 = vmatpush1.bf16.msra.mxu0 0
    %756 = vmatprep.subr.bf16.mxu0 0
    %757 = vmatpush1.bf16.msra.mxu0 0
    %758 = vmatprep.subr.bf16.mxu0 0
    %759 = vmatpush1.bf16.msra.mxu0 0
    %760 = vmatprep.subr.bf16.mxu0 0
    %761 = vmatpush1.bf16.msra.mxu0 0
    %762 = vmatprep.subr.bf16.mxu0 0
    %763 = vmatpush1.bf16.msra.mxu0 0
    %764 = vmatprep.subr.bf16.mxu0 0
    %765 = vmatpush1.bf16.msra.mxu0 0
    %766 = vmatprep.subr.bf16.mxu0 0
    %767 = vmatpush1.bf16.msra.mxu0 0
    %768 = vmatprep.subr.bf16.mxu0 0
    %769 = vmatpush1.bf16.msra.mxu0 0
    %770 = vmatprep.mubr.bf16.mxu0 0
    %771 = vmatmul.mubr.bf16.gmra.mrb[0].mxu0 %v246
    %v772 = vpop.f32.mrb[0].mxu0
    %v773 = vadd.f32 %v730, %v772
    %v774 = vpop.f32.mrb[0].mxu0
    %v775 = vadd.f32 %v732, %v774
    %v776 = vpop.f32.mrb[0].mxu0
    %v777 = vadd.f32 %v734, %v776
    %v778 = vpop.f32.mrb[0].mxu0
    %v779 = vadd.f32 %v736, %v778
    %780 = vdwg.mxu0
    %v781 = vmax.f32 %v773, 0.0
    %v782 = vmax.f32 %v775, 0.0
    %v783 = vmax.f32 %v777, 0.0
    %v784 = vmax.f32 %v779, 0.0
    %v785 = vpack.c.bf16 %v783, %v781
    %v786 = vpack.c.bf16 %v784, %v782
    %v787 = vld [vmem:[#allocation7] sm:$0xff]
    %v788 = vld [vmem:[#allocation7 + $0x8] sm:$0xff]
    %v789 = vld [vmem:[#allocation7 + $0x10] sm:$0xff]
    %v790 = vld [vmem:[#allocation7 + $0x18] sm:$0xff]
    %v791 = vld [vmem:[#allocation7 + $0x20] sm:$0xff]
    %v792 = vld [vmem:[#allocation7 + $0x28] sm:$0xff]
    %v793 = vld [vmem:[#allocation7 + $0x30] sm:$0xff]
    %v794 = vld [vmem:[#allocation7 + $0x38] sm:$0xff]
    %v795 = vld [vmem:[#allocation7 + $0x40] sm:$0xff]
    %v796 = vld [vmem:[#allocation7 + $0x48] sm:$0xff]
    %v797 = vld [vmem:[#allocation7 + $0x50] sm:$0xff]
    %v798 = vld [vmem:[#allocation7 + $0x58] sm:$0xff]
    %v799 = vld [vmem:[#allocation7 + $0x60] sm:$0xff]
    %v800 = vld [vmem:[#allocation7 + $0x68] sm:$0xff]
    %v801 = vld [vmem:[#allocation7 + $0x70] sm:$0xff]
    %v802 = vld [vmem:[#allocation7 + $0x78] sm:$0xff]
    %v803 = vld [vmem:[#allocation7 + $0x80] sm:$0xff]
    %v804 = vld [vmem:[#allocation7 + $0x88] sm:$0xff]
    %v805 = vld [vmem:[#allocation7 + $0x90] sm:$0xff]
    %v806 = vld [vmem:[#allocation7 + $0x98] sm:$0xff]
    %v807 = vld [vmem:[#allocation7 + $0xa0] sm:$0xff]
    %v808 = vld [vmem:[#allocation7 + $0xa8] sm:$0xff]
    %v809 = vld [vmem:[#allocation7 + $0xb0] sm:$0xff]
    %v810 = vld [vmem:[#allocation7 + $0xb8] sm:$0xff]
    %v811 = vld [vmem:[#allocation7 + $0xc0] sm:$0xff]
    %v812 = vld [vmem:[#allocation7 + $0xc8] sm:$0xff]
    %v813 = vld [vmem:[#allocation7 + $0xd0] sm:$0xff]
    %v814 = vld [vmem:[#allocation7 + $0xd8] sm:$0xff]
    %v815 = vld [vmem:[#allocation7 + $0xe0] sm:$0xff]
    %v816 = vld [vmem:[#allocation7 + $0xe8] sm:$0xff]
    %v817 = vld [vmem:[#allocation7 + $0xf0] sm:$0xff]
    %v818 = vld [vmem:[#allocation7 + $0xf8] sm:$0xff]
    %v851 = vunpack.c.l.b16 %v787
    %v852 = vunpack.c.h.b16 %v787
    %v853 = vunpack.c.l.b16 %v788
    %v854 = vunpack.c.h.b16 %v788
    %v855 = vunpack.c.l.b16 %v789
    %v856 = vunpack.c.h.b16 %v789
    %v857 = vunpack.c.l.b16 %v790
    %v858 = vunpack.c.h.b16 %v790
    %v859 = vunpack.c.l.b16 %v791
    %v860 = vunpack.c.h.b16 %v791
    %v861 = vunpack.c.l.b16 %v792
    %v862 = vunpack.c.h.b16 %v792
    %v863 = vunpack.c.l.b16 %v793
    %v864 = vunpack.c.h.b16 %v793
    %v865 = vunpack.c.l.b16 %v794
    %v866 = vunpack.c.h.b16 %v794
    %v867 = vunpack.c.l.b16 %v795
    %v868 = vunpack.c.h.b16 %v795
    %v869 = vunpack.c.l.b16 %v796
    %v870 = vunpack.c.h.b16 %v796
    %v871 = vunpack.c.l.b16 %v797
    %v872 = vunpack.c.h.b16 %v797
    %v873 = vunpack.c.l.b16 %v798
    %v874 = vunpack.c.h.b16 %v798
    %v875 = vunpack.c.l.b16 %v799
    %v876 = vunpack.c.h.b16 %v799
    %v877 = vunpack.c.l.b16 %v800
    %v878 = vunpack.c.h.b16 %v800
    %v879 = vunpack.c.l.b16 %v801
    %v880 = vunpack.c.h.b16 %v801
    %v881 = vunpack.c.l.b16 %v802
    %v882 = vunpack.c.h.b16 %v802
    %v883 = vunpack.c.l.b16 %v803
    %v884 = vunpack.c.h.b16 %v803
    %v885 = vunpack.c.l.b16 %v804
    %v886 = vunpack.c.h.b16 %v804
    %v887 = vunpack.c.l.b16 %v805
    %v888 = vunpack.c.h.b16 %v805
    %v889 = vunpack.c.l.b16 %v806
    %v890 = vunpack.c.h.b16 %v806
    %v891 = vunpack.c.l.b16 %v807
    %v892 = vunpack.c.h.b16 %v807
    %v893 = vunpack.c.l.b16 %v808
    %v894 = vunpack.c.h.b16 %v808
    %v895 = vunpack.c.l.b16 %v809
    %v896 = vunpack.c.h.b16 %v809
    %v897 = vunpack.c.l.b16 %v810
    %v898 = vunpack.c.h.b16 %v810
    %v899 = vunpack.c.l.b16 %v811
    %v900 = vunpack.c.h.b16 %v811
    %v901 = vunpack.c.l.b16 %v812
    %v902 = vunpack.c.h.b16 %v812
    %v903 = vunpack.c.l.b16 %v813
    %v904 = vunpack.c.h.b16 %v813
    %v905 = vunpack.c.l.b16 %v814
    %v906 = vunpack.c.h.b16 %v814
    %v907 = vunpack.c.l.b16 %v815
    %v908 = vunpack.c.h.b16 %v815
    %v909 = vunpack.c.l.b16 %v816
    %v910 = vunpack.c.h.b16 %v816
    %v911 = vunpack.c.l.b16 %v817
    %v912 = vunpack.c.h.b16 %v817
    %v913 = vunpack.c.l.b16 %v818
    %v914 = vunpack.c.h.b16 %v818
    %v915 = vpack.c.b16 %v853, %v851
    %v916 = vpack.c.b16 %v854, %v852
    %v917 = vpack.c.b16 %v857, %v855
    %v918 = vpack.c.b16 %v858, %v856
    %v919 = vpack.c.b16 %v861, %v859
    %v920 = vpack.c.b16 %v862, %v860
    %v921 = vpack.c.b16 %v865, %v863
    %v922 = vpack.c.b16 %v866, %v864
    %v923 = vpack.c.b16 %v869, %v867
    %v924 = vpack.c.b16 %v870, %v868
    %v925 = vpack.c.b16 %v873, %v871
    %v926 = vpack.c.b16 %v874, %v872
    %v927 = vpack.c.b16 %v877, %v875
    %v928 = vpack.c.b16 %v878, %v876
    %v929 = vpack.c.b16 %v881, %v879
    %v930 = vpack.c.b16 %v882, %v880
    %v931 = vpack.c.b16 %v885, %v883
    %v932 = vpack.c.b16 %v886, %v884
    %v933 = vpack.c.b16 %v889, %v887
    %v934 = vpack.c.b16 %v890, %v888
    %v935 = vpack.c.b16 %v893, %v891
    %v936 = vpack.c.b16 %v894, %v892
    %v937 = vpack.c.b16 %v897, %v895
    %v938 = vpack.c.b16 %v898, %v896
    %v939 = vpack.c.b16 %v901, %v899
    %v940 = vpack.c.b16 %v902, %v900
    %v941 = vpack.c.b16 %v905, %v903
    %v942 = vpack.c.b16 %v906, %v904
    %v943 = vpack.c.b16 %v909, %v907
    %v944 = vpack.c.b16 %v910, %v908
    %v945 = vpack.c.b16 %v913, %v911
    %v946 = vpack.c.b16 %v914, %v912
    %979 = vmatprep.subr.bf16.mxu0 %v916
    %980 = vmatpush1.bf16.msra.mxu0 %v915
    %981 = vmatprep.subr.bf16.mxu0 %v918
    %982 = vmatpush1.bf16.msra.mxu0 %v917
    %983 = vmatprep.subr.bf16.mxu0 %v920
    %984 = vmatpush1.bf16.msra.mxu0 %v919
    %985 = vmatprep.subr.bf16.mxu0 %v922
    %986 = vmatpush1.bf16.msra.mxu0 %v921
    %987 = vmatprep.subr.bf16.mxu0 %v924
    %988 = vmatpush1.bf16.msra.mxu0 %v923
    %989 = vmatprep.subr.bf16.mxu0 %v926
    %990 = vmatpush1.bf16.msra.mxu0 %v925
    %991 = vmatprep.subr.bf16.mxu0 %v928
    %992 = vmatpush1.bf16.msra.mxu0 %v927
    %993 = vmatprep.subr.bf16.mxu0 %v930
    %994 = vmatpush1.bf16.msra.mxu0 %v929
    %995 = vmatprep.subr.bf16.mxu0 %v932
    %996 = vmatpush1.bf16.msra.mxu0 %v931
    %997 = vmatprep.subr.bf16.mxu0 %v934
    %998 = vmatpush1.bf16.msra.mxu0 %v933
    %999 = vmatprep.subr.bf16.mxu0 %v936
    %1000 = vmatpush1.bf16.msra.mxu0 %v935
    %1001 = vmatprep.subr.bf16.mxu0 %v938
    %1002 = vmatpush1.bf16.msra.mxu0 %v937
    %1003 = vmatprep.subr.bf16.mxu0 %v940
    %1004 = vmatpush1.bf16.msra.mxu0 %v939
    %1005 = vmatprep.subr.bf16.mxu0 %v942
    %1006 = vmatpush1.bf16.msra.mxu0 %v941
    %1007 = vmatprep.subr.bf16.mxu0 %v944
    %1008 = vmatpush1.bf16.msra.mxu0 %v943
    %1009 = vmatprep.subr.bf16.mxu0 %v946
    %1010 = vmatpush1.bf16.msra.mxu0 %v945
    %1011 = vmatprep.mubr.bf16.mxu0 %v786
    %1012 = vmatmul.mubr.bf16.gmra.mrb[0].mxu0 %v785
    %v1013 = vpop.f32.mrb[0].mxu0
    %v1014 = vadd.f32 0.0, %v1013
    %v1015 = vpop.f32.mrb[0].mxu0
    %v1016 = vadd.f32 0.0, %v1015
    %v1017 = vpop.f32.mrb[0].mxu0
    %v1018 = vadd.f32 0.0, %v1017
    %v1019 = vpop.f32.mrb[0].mxu0
    %v1020 = vadd.f32 0.0, %v1019
    %1021 = vdwg.mxu0
    %v1022 = vmax.f32 %v1014, 0.0
    %v1023 = vmax.f32 %v1016, 0.0
    %v1024 = vmax.f32 %v1018, 0.0
    %v1025 = vmax.f32 %v1020, 0.0
    %v1026 = vpack.c.bf16 %v1024, %v1022
    %v1027 = vpack.c.bf16 %v1025, %v1023
    %v1028 = vld [vmem:[#allocation8] sm:$0xff]
    %v1029 = vld [vmem:[#allocation8 + $0x8] sm:$0xff]
    %v1030 = vld [vmem:[#allocation8 + $0x10] sm:$0xff]
    %v1031 = vld [vmem:[#allocation8 + $0x18] sm:$0xff]
    %v1032 = vld [vmem:[#allocation8 + $0x20] sm:$0xff]
    %v1033 = vld [vmem:[#allocation8 + $0x28] sm:$0xff]
    %v1034 = vld [vmem:[#allocation8 + $0x30] sm:$0xff]
    %v1035 = vld [vmem:[#allocation8 + $0x38] sm:$0xff]
    %v1036 = vld [vmem:[#allocation8 + $0x40] sm:$0xff]
    %v1037 = vld [vmem:[#allocation8 + $0x48] sm:$0xff]
    %v1038 = vld [vmem:[#allocation8 + $0x50] sm:$0xff]
    %v1039 = vld [vmem:[#allocation8 + $0x58] sm:$0xff]
    %v1040 = vld [vmem:[#allocation8 + $0x60] sm:$0xff]
    %v1041 = vld [vmem:[#allocation8 + $0x68] sm:$0xff]
    %v1042 = vld [vmem:[#allocation8 + $0x70] sm:$0xff]
    %v1043 = vld [vmem:[#allocation8 + $0x78] sm:$0xff]
    %v1044 = vld [vmem:[#allocation8 + $0x80] sm:$0xff]
    %v1045 = vld [vmem:[#allocation8 + $0x88] sm:$0xff]
    %v1046 = vld [vmem:[#allocation8 + $0x90] sm:$0xff]
    %v1047 = vld [vmem:[#allocation8 + $0x98] sm:$0xff]
    %v1048 = vld [vmem:[#allocation8 + $0xa0] sm:$0xff]
    %v1049 = vld [vmem:[#allocation8 + $0xa8] sm:$0xff]
    %v1050 = vld [vmem:[#allocation8 + $0xb0] sm:$0xff]
    %v1051 = vld [vmem:[#allocation8 + $0xb8] sm:$0xff]
    %v1052 = vld [vmem:[#allocation8 + $0xc0] sm:$0xff]
    %v1053 = vld [vmem:[#allocation8 + $0xc8] sm:$0xff]
    %v1054 = vld [vmem:[#allocation8 + $0xd0] sm:$0xff]
    %v1055 = vld [vmem:[#allocation8 + $0xd8] sm:$0xff]
    %v1056 = vld [vmem:[#allocation8 + $0xe0] sm:$0xff]
    %v1057 = vld [vmem:[#allocation8 + $0xe8] sm:$0xff]
    %v1058 = vld [vmem:[#allocation8 + $0xf0] sm:$0xff]
    %v1059 = vld [vmem:[#allocation8 + $0xf8] sm:$0xff]
    %v1092 = vunpack.c.l.b16 %v1028
    %v1093 = vunpack.c.h.b16 %v1028
    %v1094 = vunpack.c.l.b16 %v1029
    %v1095 = vunpack.c.h.b16 %v1029
    %v1096 = vunpack.c.l.b16 %v1030
    %v1097 = vunpack.c.h.b16 %v1030
    %v1098 = vunpack.c.l.b16 %v1031
    %v1099 = vunpack.c.h.b16 %v1031
    %v1100 = vunpack.c.l.b16 %v1032
    %v1101 = vunpack.c.h.b16 %v1032
    %v1102 = vunpack.c.l.b16 %v1033
    %v1103 = vunpack.c.h.b16 %v1033
    %v1104 = vunpack.c.l.b16 %v1034
    %v1105 = vunpack.c.h.b16 %v1034
    %v1106 = vunpack.c.l.b16 %v1035
    %v1107 = vunpack.c.h.b16 %v1035
    %v1108 = vunpack.c.l.b16 %v1036
    %v1109 = vunpack.c.h.b16 %v1036
    %v1110 = vunpack.c.l.b16 %v1037
    %v1111 = vunpack.c.h.b16 %v1037
    %v1112 = vunpack.c.l.b16 %v1038
    %v1113 = vunpack.c.h.b16 %v1038
    %v1114 = vunpack.c.l.b16 %v1039
    %v1115 = vunpack.c.h.b16 %v1039
    %v1116 = vunpack.c.l.b16 %v1040
    %v1117 = vunpack.c.h.b16 %v1040
    %v1118 = vunpack.c.l.b16 %v1041
    %v1119 = vunpack.c.h.b16 %v1041
    %v1120 = vunpack.c.l.b16 %v1042
    %v1121 = vunpack.c.h.b16 %v1042
    %v1122 = vunpack.c.l.b16 %v1043
    %v1123 = vunpack.c.h.b16 %v1043
    %v1124 = vunpack.c.l.b16 %v1044
    %v1125 = vunpack.c.h.b16 %v1044
    %v1126 = vunpack.c.l.b16 %v1045
    %v1127 = vunpack.c.h.b16 %v1045
    %v1128 = vunpack.c.l.b16 %v1046
    %v1129 = vunpack.c.h.b16 %v1046
    %v1130 = vunpack.c.l.b16 %v1047
    %v1131 = vunpack.c.h.b16 %v1047
    %v1132 = vunpack.c.l.b16 %v1048
    %v1133 = vunpack.c.h.b16 %v1048
    %v1134 = vunpack.c.l.b16 %v1049
    %v1135 = vunpack.c.h.b16 %v1049
    %v1136 = vunpack.c.l.b16 %v1050
    %v1137 = vunpack.c.h.b16 %v1050
    %v1138 = vunpack.c.l.b16 %v1051
    %v1139 = vunpack.c.h.b16 %v1051
    %v1140 = vunpack.c.l.b16 %v1052
    %v1141 = vunpack.c.h.b16 %v1052
    %v1142 = vunpack.c.l.b16 %v1053
    %v1143 = vunpack.c.h.b16 %v1053
    %v1144 = vunpack.c.l.b16 %v1054
    %v1145 = vunpack.c.h.b16 %v1054
    %v1146 = vunpack.c.l.b16 %v1055
    %v1147 = vunpack.c.h.b16 %v1055
    %v1148 = vunpack.c.l.b16 %v1056
    %v1149 = vunpack.c.h.b16 %v1056
    %v1150 = vunpack.c.l.b16 %v1057
    %v1151 = vunpack.c.h.b16 %v1057
    %v1152 = vunpack.c.l.b16 %v1058
    %v1153 = vunpack.c.h.b16 %v1058
    %v1154 = vunpack.c.l.b16 %v1059
    %v1155 = vunpack.c.h.b16 %v1059
    %v1156 = vpack.c.b16 %v1094, %v1092
    %v1157 = vpack.c.b16 %v1095, %v1093
    %v1158 = vpack.c.b16 %v1098, %v1096
    %v1159 = vpack.c.b16 %v1099, %v1097
    %v1160 = vpack.c.b16 %v1102, %v1100
    %v1161 = vpack.c.b16 %v1103, %v1101
    %v1162 = vpack.c.b16 %v1106, %v1104
    %v1163 = vpack.c.b16 %v1107, %v1105
    %v1164 = vpack.c.b16 %v1110, %v1108
    %v1165 = vpack.c.b16 %v1111, %v1109
    %v1166 = vpack.c.b16 %v1114, %v1112
    %v1167 = vpack.c.b16 %v1115, %v1113
    %v1168 = vpack.c.b16 %v1118, %v1116
    %v1169 = vpack.c.b16 %v1119, %v1117
    %v1170 = vpack.c.b16 %v1122, %v1120
    %v1171 = vpack.c.b16 %v1123, %v1121
    %v1172 = vpack.c.b16 %v1126, %v1124
    %v1173 = vpack.c.b16 %v1127, %v1125
    %v1174 = vpack.c.b16 %v1130, %v1128
    %v1175 = vpack.c.b16 %v1131, %v1129
    %v1176 = vpack.c.b16 %v1134, %v1132
    %v1177 = vpack.c.b16 %v1135, %v1133
    %v1178 = vpack.c.b16 %v1138, %v1136
    %v1179 = vpack.c.b16 %v1139, %v1137
    %v1180 = vpack.c.b16 %v1142, %v1140
    %v1181 = vpack.c.b16 %v1143, %v1141
    %v1182 = vpack.c.b16 %v1146, %v1144
    %v1183 = vpack.c.b16 %v1147, %v1145
    %v1184 = vpack.c.b16 %v1150, %v1148
    %v1185 = vpack.c.b16 %v1151, %v1149
    %v1186 = vpack.c.b16 %v1154, %v1152
    %v1187 = vpack.c.b16 %v1155, %v1153
    %1220 = vmatprep.subr.bf16.mxu0 %v1157
    %1221 = vmatpush1.bf16.msra.mxu0 %v1156
    %1222 = vmatprep.subr.bf16.mxu0 %v1159
    %1223 = vmatpush1.bf16.msra.mxu0 %v1158
    %1224 = vmatprep.subr.bf16.mxu0 %v1161
    %1225 = vmatpush1.bf16.msra.mxu0 %v1160
    %1226 = vmatprep.subr.bf16.mxu0 %v1163
    %1227 = vmatpush1.bf16.msra.mxu0 %v1162
    %1228 = vmatprep.subr.bf16.mxu0 %v1165
    %1229 = vmatpush1.bf16.msra.mxu0 %v1164
    %1230 = vmatprep.subr.bf16.mxu0 %v1167
    %1231 = vmatpush1.bf16.msra.mxu0 %v1166
    %1232 = vmatprep.subr.bf16.mxu0 %v1169
    %1233 = vmatpush1.bf16.msra.mxu0 %v1168
    %1234 = vmatprep.subr.bf16.mxu0 %v1171
    %1235 = vmatpush1.bf16.msra.mxu0 %v1170
    %1236 = vmatprep.subr.bf16.mxu0 %v1173
    %1237 = vmatpush1.bf16.msra.mxu0 %v1172
    %1238 = vmatprep.subr.bf16.mxu0 %v1175
    %1239 = vmatpush1.bf16.msra.mxu0 %v1174
    %1240 = vmatprep.subr.bf16.mxu0 %v1177
    %1241 = vmatpush1.bf16.msra.mxu0 %v1176
    %1242 = vmatprep.subr.bf16.mxu0 %v1179
    %1243 = vmatpush1.bf16.msra.mxu0 %v1178
    %1244 = vmatprep.subr.bf16.mxu0 %v1181
    %1245 = vmatpush1.bf16.msra.mxu0 %v1180
    %1246 = vmatprep.subr.bf16.mxu0 %v1183
    %1247 = vmatpush1.bf16.msra.mxu0 %v1182
    %1248 = vmatprep.subr.bf16.mxu0 %v1185
    %1249 = vmatpush1.bf16.msra.mxu0 %v1184
    %1250 = vmatprep.subr.bf16.mxu0 %v1187
    %1251 = vmatpush1.bf16.msra.mxu0 %v1186
    %1252 = vmatprep.mubr.bf16.mxu0 %v1027
    %1253 = vmatmul.mubr.bf16.gmra.mrb[0].mxu0 %v1026
    %v1254 = vpop.f32.mrb[0].mxu0
    %v1255 = vadd.f32 0.0, %v1254
    %v1256 = vpop.f32.mrb[0].mxu0
    %v1257 = vadd.f32 0.0, %v1256
    %v1258 = vpop.f32.mrb[0].mxu0
    %v1259 = vadd.f32 0.0, %v1258
    %v1260 = vpop.f32.mrb[0].mxu0
    %v1261 = vadd.f32 0.0, %v1260
    %1262 = vdwg.mxu0
    %v1263 = vmax.f32 %v1255, 0.0
    %v1264 = vmax.f32 %v1257, 0.0
    %v1265 = vmax.f32 %v1259, 0.0
    %v1266 = vmax.f32 %v1261, 0.0
    %v1267 = vpack.c.bf16 %v1265, %v1263
    %v1268 = vpack.c.bf16 %v1266, %v1264
    %v1269 = vld [vmem:[#allocation10] sm:$0xf]
    %v1270 = vld [vmem:[#allocation10 + $0x4] sm:$0xf]
    %v1271 = vld [vmem:[#allocation10 + $0x8] sm:$0xf]
    %v1272 = vld [vmem:[#allocation10 + $0xc] sm:$0xf]
    %v1273 = vld [vmem:[#allocation10 + $0x10] sm:$0xf]
    %v1274 = vld [vmem:[#allocation10 + $0x14] sm:$0xf]
    %v1275 = vld [vmem:[#allocation10 + $0x18] sm:$0xf]
    %v1276 = vld [vmem:[#allocation10 + $0x1c] sm:$0xf]
    %v1277 = vld [vmem:[#allocation10 + $0x20] sm:$0xf]
    %v1278 = vld [vmem:[#allocation10 + $0x24] sm:$0xf]
    %v1279 = vld [vmem:[#allocation10 + $0x28] sm:$0xf]
    %v1280 = vld [vmem:[#allocation10 + $0x2c] sm:$0xf]
    %v1281 = vld [vmem:[#allocation10 + $0x30] sm:$0xf]
    %v1282 = vld [vmem:[#allocation10 + $0x34] sm:$0xf]
    %v1283 = vld [vmem:[#allocation10 + $0x38] sm:$0xf]
    %v1284 = vld [vmem:[#allocation10 + $0x3c] sm:$0xf]
    %v1285 = vld [vmem:[#allocation10 + $0x40] sm:$0xf]
    %v1286 = vld [vmem:[#allocation10 + $0x44] sm:$0xf]
    %v1287 = vld [vmem:[#allocation10 + $0x48] sm:$0xf]
    %v1288 = vld [vmem:[#allocation10 + $0x4c] sm:$0xf]
    %v1289 = vld [vmem:[#allocation10 + $0x50] sm:$0xf]
    %v1290 = vld [vmem:[#allocation10 + $0x54] sm:$0xf]
    %v1291 = vld [vmem:[#allocation10 + $0x58] sm:$0xf]
    %v1292 = vld [vmem:[#allocation10 + $0x5c] sm:$0xf]
    %v1293 = vld [vmem:[#allocation10 + $0x60] sm:$0xf]
    %v1294 = vld [vmem:[#allocation10 + $0x64] sm:$0xf]
    %v1295 = vld [vmem:[#allocation10 + $0x68] sm:$0xf]
    %v1296 = vld [vmem:[#allocation10 + $0x6c] sm:$0xf]
    %v1297 = vld [vmem:[#allocation10 + $0x70] sm:$0xf]
    %v1298 = vld [vmem:[#allocation10 + $0x74] sm:$0xf]
    %v1299 = vld [vmem:[#allocation10 + $0x78] sm:$0xf]
    %v1300 = vld [vmem:[#allocation10 + $0x7c] sm:$0xf]
    %v1333 = vunpack.c.l.b16 %v1269
    %v1334 = vunpack.c.l.b16 %v1270
    %v1335 = vunpack.c.l.b16 %v1271
    %v1336 = vunpack.c.l.b16 %v1272
    %v1337 = vunpack.c.l.b16 %v1273
    %v1338 = vunpack.c.l.b16 %v1274
    %v1339 = vunpack.c.l.b16 %v1275
    %v1340 = vunpack.c.l.b16 %v1276
    %v1341 = vunpack.c.l.b16 %v1277
    %v1342 = vunpack.c.l.b16 %v1278
    %v1343 = vunpack.c.l.b16 %v1279
    %v1344 = vunpack.c.l.b16 %v1280
    %v1345 = vunpack.c.l.b16 %v1281
    %v1346 = vunpack.c.l.b16 %v1282
    %v1347 = vunpack.c.l.b16 %v1283
    %v1348 = vunpack.c.l.b16 %v1284
    %v1349 = vunpack.c.l.b16 %v1285
    %v1350 = vunpack.c.l.b16 %v1286
    %v1351 = vunpack.c.l.b16 %v1287
    %v1352 = vunpack.c.l.b16 %v1288
    %v1353 = vunpack.c.l.b16 %v1289
    %v1354 = vunpack.c.l.b16 %v1290
    %v1355 = vunpack.c.l.b16 %v1291
    %v1356 = vunpack.c.l.b16 %v1292
    %v1357 = vunpack.c.l.b16 %v1293
    %v1358 = vunpack.c.l.b16 %v1294
    %v1359 = vunpack.c.l.b16 %v1295
    %v1360 = vunpack.c.l.b16 %v1296
    %v1361 = vunpack.c.l.b16 %v1297
    %v1362 = vunpack.c.l.b16 %v1298
    %v1363 = vunpack.c.l.b16 %v1299
    %v1364 = vunpack.c.l.b16 %v1300
    %v1365 = vpack.c.b16 %v1334, %v1333
    %v1366 = vpack.c.b16 %v1336, %v1335
    %v1367 = vpack.c.b16 %v1338, %v1337
    %v1368 = vpack.c.b16 %v1340, %v1339
    %v1369 = vpack.c.b16 %v1342, %v1341
    %v1370 = vpack.c.b16 %v1344, %v1343
    %v1371 = vpack.c.b16 %v1346, %v1345
    %v1372 = vpack.c.b16 %v1348, %v1347
    %v1373 = vpack.c.b16 %v1350, %v1349
    %v1374 = vpack.c.b16 %v1352, %v1351
    %v1375 = vpack.c.b16 %v1354, %v1353
    %v1376 = vpack.c.b16 %v1356, %v1355
    %v1377 = vpack.c.b16 %v1358, %v1357
    %v1378 = vpack.c.b16 %v1360, %v1359
    %v1379 = vpack.c.b16 %v1362, %v1361
    %v1380 = vpack.c.b16 %v1364, %v1363
    %1397 = vmatprep.subr.bf16.mxu0 0
    %1398 = vmatpush1.bf16.msra.mxu0 %v1365
    %1399 = vmatprep.subr.bf16.mxu0 0
    %1400 = vmatpush1.bf16.msra.mxu0 %v1366
    %1401 = vmatprep.subr.bf16.mxu0 0
    %1402 = vmatpush1.bf16.msra.mxu0 %v1367
    %1403 = vmatprep.subr.bf16.mxu0 0
    %1404 = vmatpush1.bf16.msra.mxu0 %v1368
    %1405 = vmatprep.subr.bf16.mxu0 0
    %1406 = vmatpush1.bf16.msra.mxu0 %v1369
    %1407 = vmatprep.subr.bf16.mxu0 0
    %1408 = vmatpush1.bf16.msra.mxu0 %v1370
    %1409 = vmatprep.subr.bf16.mxu0 0
    %1410 = vmatpush1.bf16.msra.mxu0 %v1371
    %1411 = vmatprep.subr.bf16.mxu0 0
    %1412 = vmatpush1.bf16.msra.mxu0 %v1372
    %1413 = vmatprep.subr.bf16.mxu0 0
    %1414 = vmatpush1.bf16.msra.mxu0 %v1373
    %1415 = vmatprep.subr.bf16.mxu0 0
    %1416 = vmatpush1.bf16.msra.mxu0 %v1374
    %1417 = vmatprep.subr.bf16.mxu0 0
    %1418 = vmatpush1.bf16.msra.mxu0 %v1375
    %1419 = vmatprep.subr.bf16.mxu0 0
    %1420 = vmatpush1.bf16.msra.mxu0 %v1376
    %1421 = vmatprep.subr.bf16.mxu0 0
    %1422 = vmatpush1.bf16.msra.mxu0 %v1377
    %1423 = vmatprep.subr.bf16.mxu0 0
    %1424 = vmatpush1.bf16.msra.mxu0 %v1378
    %1425 = vmatprep.subr.bf16.mxu0 0
    %1426 = vmatpush1.bf16.msra.mxu0 %v1379
    %1427 = vmatprep.subr.bf16.mxu0 0
    %1428 = vmatpush1.bf16.msra.mxu0 %v1380
    %1429 = vmatprep.mubr.bf16.mxu0 %v1268
    %1430 = vmatmul.mubr.bf16.gmra.mrb[0].mxu0 %v1267
    %v1431 = vpop.f32.mrb[0].mxu0
    %v1432 = vadd.f32 0.0, %v1431
    %v1433 = vpop.f32.mrb[0].mxu0
    %v1434 = vpop.f32.mrb[0].mxu0
    %v1435 = vadd.f32 0.0, %v1434
    %v1436 = vpop.f32.mrb[0].mxu0
    %1437 = vdwg.mxu0
    %v1438 = vmax.f32 %v1432, 0.0
    %v1439 = vmax.f32 %v1435, 0.0
    %v1440 = vpack.c.bf16 %v1439, %v1438
    %v1441 = vld [vmem:[#allocation11] sm:$0xf]
    %v1442 = vld [vmem:[#allocation11 + $0x4] sm:$0xf]
    %v1443 = vld [vmem:[#allocation11 + $0x8] sm:$0xf]
    %v1444 = vld [vmem:[#allocation11 + $0xc] sm:$0xf]
    %v1445 = vld [vmem:[#allocation11 + $0x10] sm:$0xf]
    %v1446 = vld [vmem:[#allocation11 + $0x14] sm:$0xf]
    %v1447 = vld [vmem:[#allocation11 + $0x18] sm:$0xf]
    %v1448 = vld [vmem:[#allocation11 + $0x1c] sm:$0xf]
    %v1449 = vld [vmem:[#allocation11 + $0x20] sm:$0xf]
    %v1450 = vld [vmem:[#allocation11 + $0x24] sm:$0xf]
    %v1451 = vld [vmem:[#allocation11 + $0x28] sm:$0xf]
    %v1452 = vld [vmem:[#allocation11 + $0x2c] sm:$0xf]
    %v1453 = vld [vmem:[#allocation11 + $0x30] sm:$0xf]
    %v1454 = vld [vmem:[#allocation11 + $0x34] sm:$0xf]
    %v1455 = vld [vmem:[#allocation11 + $0x38] sm:$0xf]
    %v1456 = vld [vmem:[#allocation11 + $0x3c] sm:$0xf]
    %v1473 = vunpack.c.l.b16 %v1441
    %v1474 = vunpack.c.l.b16 %v1442
    %v1475 = vunpack.c.l.b16 %v1443
    %v1476 = vunpack.c.l.b16 %v1444
    %v1477 = vunpack.c.l.b16 %v1445
    %v1478 = vunpack.c.l.b16 %v1446
    %v1479 = vunpack.c.l.b16 %v1447
    %v1480 = vunpack.c.l.b16 %v1448
    %v1481 = vunpack.c.l.b16 %v1449
    %v1482 = vunpack.c.l.b16 %v1450
    %v1483 = vunpack.c.l.b16 %v1451
    %v1484 = vunpack.c.l.b16 %v1452
    %v1485 = vunpack.c.l.b16 %v1453
    %v1486 = vunpack.c.l.b16 %v1454
    %v1487 = vunpack.c.l.b16 %v1455
    %v1488 = vunpack.c.l.b16 %v1456
    %v1489 = vpack.c.b16 %v1474, %v1473
    %v1490 = vpack.c.b16 %v1476, %v1475
    %v1491 = vpack.c.b16 %v1478, %v1477
    %v1492 = vpack.c.b16 %v1480, %v1479
    %v1493 = vpack.c.b16 %v1482, %v1481
    %v1494 = vpack.c.b16 %v1484, %v1483
    %v1495 = vpack.c.b16 %v1486, %v1485
    %v1496 = vpack.c.b16 %v1488, %v1487
    %1505 = vmatprep.subr.bf16.mxu0 0
    %1506 = vmatpush1.bf16.msra.mxu0 %v1489
    %1507 = vmatprep.subr.bf16.mxu0 0
    %1508 = vmatpush1.bf16.msra.mxu0 %v1490
    %1509 = vmatprep.subr.bf16.mxu0 0
    %1510 = vmatpush1.bf16.msra.mxu0 %v1491
    %1511 = vmatprep.subr.bf16.mxu0 0
    %1512 = vmatpush1.bf16.msra.mxu0 %v1492
    %1513 = vmatprep.subr.bf16.mxu0 0
    %1514 = vmatpush1.bf16.msra.mxu0 %v1493
    %1515 = vmatprep.subr.bf16.mxu0 0
    %1516 = vmatpush1.bf16.msra.mxu0 %v1494
    %1517 = vmatprep.subr.bf16.mxu0 0
    %1518 = vmatpush1.bf16.msra.mxu0 %v1495
    %1519 = vmatprep.subr.bf16.mxu0 0
    %1520 = vmatpush1.bf16.msra.mxu0 %v1496
    %1521 = vmatprep.subr.bf16.mxu0 0
    %1522 = vmatpush1.bf16.msra.mxu0 0
    %1523 = vmatprep.subr.bf16.mxu0 0
    %1524 = vmatpush1.bf16.msra.mxu0 0
    %1525 = vmatprep.subr.bf16.mxu0 0
    %1526 = vmatpush1.bf16.msra.mxu0 0
    %1527 = vmatprep.subr.bf16.mxu0 0
    %1528 = vmatpush1.bf16.msra.mxu0 0
    %1529 = vmatprep.subr.bf16.mxu0 0
    %1530 = vmatpush1.bf16.msra.mxu0 0
    %1531 = vmatprep.subr.bf16.mxu0 0
    %1532 = vmatpush1.bf16.msra.mxu0 0
    %1533 = vmatprep.subr.bf16.mxu0 0
    %1534 = vmatpush1.bf16.msra.mxu0 0
    %1535 = vmatprep.subr.bf16.mxu0 0
    %1536 = vmatpush1.bf16.msra.mxu0 0
    %1537 = vmatprep.mubr.bf16.mxu0 0
    %1538 = vmatmul.mubr.bf16.gmra.mrb[0].mxu0 %v1440
    %v1539 = vpop.f32.mrb[0].mxu0
    %v1540 = vadd.f32 0.0, %v1539
    %v1541 = vpop.f32.mrb[0].mxu0
    %v1542 = vpop.f32.mrb[0].mxu0
    %v1543 = vadd.f32 0.0, %v1542
    %v1544 = vpop.f32.mrb[0].mxu0
    %1545 = vdwg.mxu0
    %v1546 = vmax.f32 %v1540, 0.0
    %v1547 = vmax.f32 %v1543, 0.0
    %v1548 = vpack.c.bf16 %v1547, %v1546
    %v1549 = vld [vmem:[#allocation13] sm:$0xf]
    %v1550 = vld [vmem:[#allocation13 + $0x4] sm:$0xf]
    %v1551 = vld [vmem:[#allocation13 + $0x8] sm:$0xf]
    %v1552 = vld [vmem:[#allocation13 + $0xc] sm:$0xf]
    %v1553 = vld [vmem:[#allocation13 + $0x10] sm:$0xf]
    %v1554 = vld [vmem:[#allocation13 + $0x14] sm:$0xf]
    %v1555 = vld [vmem:[#allocation13 + $0x18] sm:$0xf]
    %v1556 = vld [vmem:[#allocation13 + $0x1c] sm:$0xf]
    %v1557 = vld [vmem:[#allocation13 + $0x20] sm:$0xf]
    %v1558 = vld [vmem:[#allocation13 + $0x24] sm:$0xf]
    %v1559 = vld [vmem:[#allocation13 + $0x28] sm:$0xf]
    %v1560 = vld [vmem:[#allocation13 + $0x2c] sm:$0xf]
    %v1561 = vld [vmem:[#allocation13 + $0x30] sm:$0xf]
    %v1562 = vld [vmem:[#allocation13 + $0x34] sm:$0xf]
    %v1563 = vld [vmem:[#allocation13 + $0x38] sm:$0xf]
    %v1564 = vld [vmem:[#allocation13 + $0x3c] sm:$0xf]
    %v1581 = vunpack.c.l.b16 %v1549
    %v1582 = vunpack.c.l.b16 %v1550
    %v1583 = vunpack.c.l.b16 %v1551
    %v1584 = vunpack.c.l.b16 %v1552
    %v1585 = vunpack.c.l.b16 %v1553
    %v1586 = vunpack.c.l.b16 %v1554
    %v1587 = vunpack.c.l.b16 %v1555
    %v1588 = vunpack.c.l.b16 %v1556
    %v1589 = vunpack.c.l.b16 %v1557
    %v1590 = vunpack.c.l.b16 %v1558
    %v1591 = vunpack.c.l.b16 %v1559
    %v1592 = vunpack.c.l.b16 %v1560
    %v1593 = vunpack.c.l.b16 %v1561
    %v1594 = vunpack.c.l.b16 %v1562
    %v1595 = vunpack.c.l.b16 %v1563
    %v1596 = vunpack.c.l.b16 %v1564
    %v1597 = vpack.c.b16 %v1582, %v1581
    %v1598 = vpack.c.b16 %v1584, %v1583
    %v1599 = vpack.c.b16 %v1586, %v1585
    %v1600 = vpack.c.b16 %v1588, %v1587
    %v1601 = vpack.c.b16 %v1590, %v1589
    %v1602 = vpack.c.b16 %v1592, %v1591
    %v1603 = vpack.c.b16 %v1594, %v1593
    %v1604 = vpack.c.b16 %v1596, %v1595
    %1613 = vmatprep.subr.bf16.mxu0 0
    %1614 = vmatpush1.bf16.msra.mxu0 %v1597
    %1615 = vmatprep.subr.bf16.mxu0 0
    %1616 = vmatpush1.bf16.msra.mxu0 %v1598
    %1617 = vmatprep.subr.bf16.mxu0 0
    %1618 = vmatpush1.bf16.msra.mxu0 %v1599
    %1619 = vmatprep.subr.bf16.mxu0 0
    %1620 = vmatpush1.bf16.msra.mxu0 %v1600
    %1621 = vmatprep.subr.bf16.mxu0 0
    %1622 = vmatpush1.bf16.msra.mxu0 %v1601
    %1623 = vmatprep.subr.bf16.mxu0 0
    %1624 = vmatpush1.bf16.msra.mxu0 %v1602
    %1625 = vmatprep.subr.bf16.mxu0 0
    %1626 = vmatpush1.bf16.msra.mxu0 %v1603
    %1627 = vmatprep.subr.bf16.mxu0 0
    %1628 = vmatpush1.bf16.msra.mxu0 %v1604
    %1629 = vmatprep.subr.bf16.mxu0 0
    %1630 = vmatpush1.bf16.msra.mxu0 0
    %1631 = vmatprep.subr.bf16.mxu0 0
    %1632 = vmatpush1.bf16.msra.mxu0 0
    %1633 = vmatprep.subr.bf16.mxu0 0
    %1634 = vmatpush1.bf16.msra.mxu0 0
    %1635 = vmatprep.subr.bf16.mxu0 0
    %1636 = vmatpush1.bf16.msra.mxu0 0
    %1637 = vmatprep.subr.bf16.mxu0 0
    %1638 = vmatpush1.bf16.msra.mxu0 0
    %1639 = vmatprep.subr.bf16.mxu0 0
    %1640 = vmatpush1.bf16.msra.mxu0 0
    %1641 = vmatprep.subr.bf16.mxu0 0
    %1642 = vmatpush1.bf16.msra.mxu0 0
    %1643 = vmatprep.subr.bf16.mxu0 0
    %1644 = vmatpush1.bf16.msra.mxu0 0
    %1645 = vmatprep.mubr.bf16.mxu0 0
    %1646 = vmatmul.mubr.bf16.gmra.mrb[0].mxu0 %v1548
    %v1647 = vpop.f32.mrb[0].mxu0
    %v1648 = vadd.f32 0.0, %v1647
    %v1649 = vpop.f32.mrb[0].mxu0
    %v1650 = vpop.f32.mrb[0].mxu0
    %v1651 = vadd.f32 0.0, %v1650
    %v1652 = vpop.f32.mrb[0].mxu0
    %1653 = vdwg.mxu0
    %v1654 = vmax.f32 %v1648, 0.0
    %v1655 = vmax.f32 %v1651, 0.0
    %v1656 = vpack.c.bf16 %v1655, %v1654
    %v1657 = vld [vmem:[#allocation14] sm:$0xf]
    %v1658 = vld [vmem:[#allocation14 + $0x4] sm:$0xf]
    %v1659 = vld [vmem:[#allocation14 + $0x8] sm:$0xf]
    %v1660 = vld [vmem:[#allocation14 + $0xc] sm:$0xf]
    %v1661 = vld [vmem:[#allocation14 + $0x10] sm:$0xf]
    %v1662 = vld [vmem:[#allocation14 + $0x14] sm:$0xf]
    %v1663 = vld [vmem:[#allocation14 + $0x18] sm:$0xf]
    %v1664 = vld [vmem:[#allocation14 + $0x1c] sm:$0xf]
    %v1665 = vld [vmem:[#allocation14 + $0x20] sm:$0xf]
    %v1666 = vld [vmem:[#allocation14 + $0x24] sm:$0xf]
    %v1667 = vld [vmem:[#allocation14 + $0x28] sm:$0xf]
    %v1668 = vld [vmem:[#allocation14 + $0x2c] sm:$0xf]
    %v1669 = vld [vmem:[#allocation14 + $0x30] sm:$0xf]
    %v1670 = vld [vmem:[#allocation14 + $0x34] sm:$0xf]
    %v1671 = vld [vmem:[#allocation14 + $0x38] sm:$0xf]
    %v1672 = vld [vmem:[#allocation14 + $0x3c] sm:$0xf]
    %v1689 = vunpack.c.l.b16 %v1657
    %v1690 = vunpack.c.l.b16 %v1658
    %v1691 = vunpack.c.l.b16 %v1659
    %v1692 = vunpack.c.l.b16 %v1660
    %v1693 = vunpack.c.l.b16 %v1661
    %v1694 = vunpack.c.l.b16 %v1662
    %v1695 = vunpack.c.l.b16 %v1663
    %v1696 = vunpack.c.l.b16 %v1664
    %v1697 = vunpack.c.l.b16 %v1665
    %v1698 = vunpack.c.l.b16 %v1666
    %v1699 = vunpack.c.l.b16 %v1667
    %v1700 = vunpack.c.l.b16 %v1668
    %v1701 = vunpack.c.l.b16 %v1669
    %v1702 = vunpack.c.l.b16 %v1670
    %v1703 = vunpack.c.l.b16 %v1671
    %v1704 = vunpack.c.l.b16 %v1672
    %v1705 = vpack.c.b16 %v1690, %v1689
    %v1706 = vpack.c.b16 %v1692, %v1691
    %v1707 = vpack.c.b16 %v1694, %v1693
    %v1708 = vpack.c.b16 %v1696, %v1695
    %v1709 = vpack.c.b16 %v1698, %v1697
    %v1710 = vpack.c.b16 %v1700, %v1699
    %v1711 = vpack.c.b16 %v1702, %v1701
    %v1712 = vpack.c.b16 %v1704, %v1703
    %1721 = vmatprep.subr.bf16.mxu0 0
    %1722 = vmatpush1.bf16.msra.mxu0 %v1705
    %1723 = vmatprep.subr.bf16.mxu0 0
    %1724 = vmatpush1.bf16.msra.mxu0 %v1706
    %1725 = vmatprep.subr.bf16.mxu0 0
    %1726 = vmatpush1.bf16.msra.mxu0 %v1707
    %1727 = vmatprep.subr.bf16.mxu0 0
    %1728 = vmatpush1.bf16.msra.mxu0 %v1708
    %1729 = vmatprep.subr.bf16.mxu0 0
    %1730 = vmatpush1.bf16.msra.mxu0 %v1709
    %1731 = vmatprep.subr.bf16.mxu0 0
    %1732 = vmatpush1.bf16.msra.mxu0 %v1710
    %1733 = vmatprep.subr.bf16.mxu0 0
    %1734 = vmatpush1.bf16.msra.mxu0 %v1711
    %1735 = vmatprep.subr.bf16.mxu0 0
    %1736 = vmatpush1.bf16.msra.mxu0 %v1712
    %1737 = vmatprep.subr.bf16.mxu0 0
    %1738 = vmatpush1.bf16.msra.mxu0 0
    %1739 = vmatprep.subr.bf16.mxu0 0
    %1740 = vmatpush1.bf16.msra.mxu0 0
    %1741 = vmatprep.subr.bf16.mxu0 0
    %1742 = vmatpush1.bf16.msra.mxu0 0
    %1743 = vmatprep.subr.bf16.mxu0 0
    %1744 = vmatpush1.bf16.msra.mxu0 0
    %1745 = vmatprep.subr.bf16.mxu0 0
    %1746 = vmatpush1.bf16.msra.mxu0 0
    %1747 = vmatprep.subr.bf16.mxu0 0
    %1748 = vmatpush1.bf16.msra.mxu0 0
    %1749 = vmatprep.subr.bf16.mxu0 0
    %1750 = vmatpush1.bf16.msra.mxu0 0
    %1751 = vmatprep.subr.bf16.mxu0 0
    %1752 = vmatpush1.bf16.msra.mxu0 0
    %1753 = vmatprep.mubr.bf16.mxu0 0
    %1754 = vmatmul.mubr.bf16.gmra.mrb[0].mxu0 %v1656
    %v1755 = vpop.f32.mrb[0].mxu0
    %v1756 = vadd.f32 0.0, %v1755
    %v1757 = vpop.f32.mrb[0].mxu0
    %v1758 = vpop.f32.mrb[0].mxu0
    %v1759 = vadd.f32 0.0, %v1758
    %v1760 = vpop.f32.mrb[0].mxu0
    %1761 = vdwg.mxu0
    %1762 = vst [vmem:[#allocation16] sm:$0xff] %v1756
    %1763 = vst [vmem:[#allocation16 + $0x8] sm:$0xff] %v1759
    // Predicated region
    $region66: #{tpu_custom_call.1} parent=1 // pred_check
      _
    $region67: #{tpu_custom_call.1} parent=1 // pred_check_branch
      %1765 = sbr.rel (0) target = $region69
    $region68: #{tpu_custom_call.1} parent=1 // pred_region
      %s1767 = ssub.s32 256, 256
      %1768 = vsyncadd [#allocation4], %s1767
      %s1769 = sshll.u32 [#allocation16], 4
      %s1770 = int_to_ptr.vmem [resolvable:$true] %s1769
      %1775 = dma.vmem_to_hbm [thread:$0]  %s1770, 256, %s8, [#allocation4], 128, 128, 8
    $region69: #{tpu_custom_call.1} parent=1 // pred_fallthru
      _
    // Predicated region
    $region70: #{tpu_custom_call.1} parent=1 // pred_check
      _
    $region71: #{tpu_custom_call.1} parent=1 // pred_check_branch
      %1777 = sbr.rel (0) target = $region73
    $region72: #{tpu_custom_call.1} parent=1 // pred_region
      %1778 = dma.done [#allocation4], 256
    $region73: #{tpu_custom_call.1} parent=1 // pred_fallthru
      _
    %1779 = vsyncpa [#allocation3], 1
    %1780 = vsyncpa [#allocation6], 1
    %1781 = vsyncpa [#allocation9], 1
    %1782 = vsyncpa [#allocation12], 1
    %1783 = vsyncpa [#allocation15], 1
    %1784 = vsyncpa [#allocation4], 1

</llo_original>
